<compile_context>
chip_gen: v6e
topology: v6e:2x2x1
jax: 0.10.0
libtpu: 0.0.40
codegen_flags: <defaults>
</compile_context>

<pallas_src>
import jax
import jax.numpy as jnp
from jax.experimental import pallas as pl
from jax.experimental.pallas import tpu as pltpu

INPUT_DIM = 1
HIDDEN_DIM = 128
OUTPUT_DIM = 100


def mlp_kernel(x_ref, w1_ref, b1_ref, w2_ref, b2_ref, w3_ref, b3_ref,
               w4_ref, b4_ref, o_ref):
    # Layer 1 has K=1 -> would be a degenerate MXU matmul (K padded to 128/256).
    # Do it on the VPU as a broadcast outer product: (bt,1) * (1,128) + (1,128).
    h = x_ref[...] * w1_ref[...] + b1_ref[...]
    h = jnp.maximum(h, 0.0)

    # Hidden layers on the MXU. Operands in the weights' dtype (fp32 or bf16);
    # accumulation, bias add and ReLU stay fp32 (v5e VPU/EUP have no bf16).
    h = jnp.dot(h.astype(w2_ref.dtype), w2_ref[...],
                preferred_element_type=jnp.float32) + b2_ref[...]
    h = jnp.maximum(h, 0.0)
    h = jnp.dot(h.astype(w3_ref.dtype), w3_ref[...],
                preferred_element_type=jnp.float32) + b3_ref[...]
    h = jnp.maximum(h, 0.0)

    # 100-wide head stored directly (masked vst on 100/128 lanes). Cheaper than a
    # padded 128-wide store followed by a post-kernel column-slice HBM round trip.
    o_ref[...] = (jnp.dot(h.astype(w4_ref.dtype), w4_ref[...],
                          preferred_element_type=jnp.float32)
                  + b4_ref[...]).astype(o_ref.dtype)


def _choose_batch_tile(n, *, cap=2048, floor=256):
    """Large tiles to amortize grid-step overhead; >=~8 steps for big batches so both
    v7x TensorCores stay busy; never below `floor` rows; always a multiple of 8."""
    if n <= floor:
        return max(8, ((n + 7) // 8) * 8)          # one sublane-aligned tile
    return max(floor, min(cap, ((n // 8) // floor) * floor))


def ode_mlp_forward(x, params, *, batch_tile=None, out_dtype=jnp.float32):
    """x: (N, INPUT_DIM) -> (N, OUTPUT_DIM). Any N (batch padded internally)."""
    (w1, b1), (w2, b2), (w3, b3), (w4, b4) = params

    n = x.shape[0]
    if batch_tile is None:
        batch_tile = _choose_batch_tile(n)
    assert batch_tile % 8 == 0, "batch_tile must be a multiple of 8 (sublane)"

    n_pad = pl.cdiv(n, batch_tile) * batch_tile
    if n_pad != n:
        x = jnp.pad(x, ((0, n_pad - n), (0, 0)))

    grid = (n_pad // batch_tile,)

    def const_spec(arr):
        # Weights / biases: one full block, constant index_map -> fetched once,
        # stays VMEM-resident across grid steps.
        return pl.BlockSpec(arr.shape, lambda i: (0, 0))

    out = pl.pallas_call(
        mlp_kernel,
        out_shape=jax.ShapeDtypeStruct((n_pad, OUTPUT_DIM), out_dtype),
        grid_spec=pl.GridSpec(
            grid=grid,
            in_specs=[
                pl.BlockSpec((batch_tile, INPUT_DIM), lambda i: (i, 0)),
                const_spec(w1), const_spec(b1),
                const_spec(w2), const_spec(b2),
                const_spec(w3), const_spec(b3),
                const_spec(w4), const_spec(b4),
            ],
            out_specs=pl.BlockSpec((batch_tile, OUTPUT_DIM), lambda i: (i, 0)),
        ),
        compiler_params=pltpu.CompilerParams(
            dimension_semantics=("parallel",),   # batch axis shards across TCs (v7x)
            vmem_limit_bytes=32 << 20,           # <8 MiB actually needed at tile=2048
        ),
    )(x, w1, b1, w2, b2, w3, b3, w4, b4)

    if n_pad != n:
        out = out[:n]                            # row slice only when batch was padded
    return out


def init_params(key, dtype=jnp.float32):
    """Init mirroring nn.Linear defaults (U[-1/sqrt(fan_in), +1/sqrt(fan_in)]).

    Weights stored as (in_features, out_features) so the kernel does y = x @ W + b.
    Pass dtype=jnp.bfloat16 for bf16 matmul operands (fp32 accumulation in-kernel);
    biases stay fp32 so the bias add happens at accumulation precision.
    """
    dims = [(INPUT_DIM, HIDDEN_DIM),
            (HIDDEN_DIM, HIDDEN_DIM),
            (HIDDEN_DIM, HIDDEN_DIM),
            (HIDDEN_DIM, OUTPUT_DIM)]
    params = []
    for (fan_in, fan_out) in dims:
        key, kw, kb = jax.random.split(key, 3)
        bound = 1.0 / jnp.sqrt(fan_in)
        w = jax.random.uniform(kw, (fan_in, fan_out), jnp.float32, -bound, bound)
        b = jax.random.uniform(kb, (1, fan_out), jnp.float32, -bound, bound)
        params.append((w.astype(dtype), b))
    return params


def reference_forward(x, params):
    h = x
    for i, (w, b) in enumerate(params):
        h = h @ w.astype(jnp.float32) + b
        if i < len(params) - 1:
            h = jnp.maximum(h, 0.0)
    return h


if __name__ == "__main__":
    key = jax.random.PRNGKey(0)
    key, kx, kx2 = jax.random.split(key, 3)

    # ---- fp32 weights: tight reference check; batch=512 -> tile 256, grid of 2
    # steps so the batch axis actually shards across both TCs on v7x. ----
    params = init_params(key)
    batch = 512
    x = jax.random.uniform(kx, (batch, INPUT_DIM), jnp.float32, 0.0, 1.0)
    y = jax.block_until_ready(ode_mlp_forward(x, params))
    y_ref = reference_forward(x, params)
    assert y.shape == (batch, OUTPUT_DIM)
    assert jnp.allclose(y, y_ref, atol=1e-4, rtol=1e-4), "mismatch vs reference (fp32)"

    # ---- Ragged-batch check: exercises pad-to-tile / row-slice-back path. ----
    batch2 = 50
    x2 = jax.random.uniform(kx2, (batch2, INPUT_DIM), jnp.float32, 0.0, 1.0)
    y2 = jax.block_until_ready(ode_mlp_forward(x2, params))
    y2_ref = reference_forward(x2, params)
    assert y2.shape == (batch2, OUTPUT_DIM)
    assert jnp.allclose(y2, y2_ref, atol=1e-4, rtol=1e-4), "mismatch (ragged) vs reference"

    # ---- bf16 matmul datapath (fp32 accumulation): looser tolerance. ----
    params_bf16 = init_params(key, dtype=jnp.bfloat16)
    y3 = jax.block_until_ready(ode_mlp_forward(x, params_bf16))
    y3_ref = reference_forward(x, params_bf16)
    assert y3.shape == (batch, OUTPUT_DIM)
    assert jnp.allclose(y3, y3_ref, atol=2e-2, rtol=2e-2), "mismatch vs reference (bf16)"

    print("KERNEL_OK")
</pallas_src>

<mosaic_0001>
module attributes {stable_mosaic.version = 11 : i64} {
  func.func @mlp_kernel(%arg0: i32, %arg1: memref<256x1xf32, #tpu.memory_space<vmem>>, %arg2: memref<1x128xf32, #tpu.memory_space<vmem>>, %arg3: memref<1x128xf32, #tpu.memory_space<vmem>>, %arg4: memref<128x128xf32, #tpu.memory_space<vmem>>, %arg5: memref<1x128xf32, #tpu.memory_space<vmem>>, %arg6: memref<128x128xf32, #tpu.memory_space<vmem>>, %arg7: memref<1x128xf32, #tpu.memory_space<vmem>>, %arg8: memref<128x100xf32, #tpu.memory_space<vmem>>, %arg9: memref<1x100xf32, #tpu.memory_space<vmem>>, %arg10: memref<256x100xf32, #tpu.memory_space<vmem>>) attributes {dimension_semantics = [#tpu.dimension_semantics<parallel>], iteration_bounds = array<i64: 2>, scalar_prefetch = 0 : i64, scratch_operands = 0 : i64, tpu.core_type = #tpu.core_type<tc>, window_params = [{transform_indices = @transform_0, window_bounds = array<i64: 256, 1>}, {pipeline_mode = #tpu.pipeline_mode<synchronous>, transform_indices = @transform_1, window_bounds = array<i64: 1, 128>}, {pipeline_mode = #tpu.pipeline_mode<synchronous>, transform_indices = @transform_2, window_bounds = array<i64: 1, 128>}, {pipeline_mode = #tpu.pipeline_mode<synchronous>, transform_indices = @transform_3, window_bounds = array<i64: 128, 128>}, {pipeline_mode = #tpu.pipeline_mode<synchronous>, transform_indices = @transform_4, window_bounds = array<i64: 1, 128>}, {pipeline_mode = #tpu.pipeline_mode<synchronous>, transform_indices = @transform_5, window_bounds = array<i64: 128, 128>}, {pipeline_mode = #tpu.pipeline_mode<synchronous>, transform_indices = @transform_6, window_bounds = array<i64: 1, 128>}, {pipeline_mode = #tpu.pipeline_mode<synchronous>, transform_indices = @transform_7, window_bounds = array<i64: 128, 100>}, {pipeline_mode = #tpu.pipeline_mode<synchronous>, transform_indices = @transform_8, window_bounds = array<i64: 1, 100>}, {transform_indices = @transform_9, window_bounds = array<i64: 256, 100>}]} {
    %c0 = arith.constant 0 : index
    %c0_0 = arith.constant 0 : index
    %0 = vector.load %arg1[%c0, %c0_0] : memref<256x1xf32, #tpu.memory_space<vmem>>, vector<256x1xf32>
    %c0_1 = arith.constant 0 : index
    %c0_2 = arith.constant 0 : index
    %1 = vector.load %arg2[%c0_1, %c0_2] : memref<1x128xf32, #tpu.memory_space<vmem>>, vector<1x128xf32>
    %2 = vector.broadcast %0 : vector<256x1xf32> to vector<256x128xf32>
    %3 = vector.broadcast %1 : vector<1x128xf32> to vector<256x128xf32>
    %4 = arith.mulf %2, %3 : vector<256x128xf32>
    %c0_3 = arith.constant 0 : index
    %c0_4 = arith.constant 0 : index
    %5 = vector.load %arg3[%c0_3, %c0_4] : memref<1x128xf32, #tpu.memory_space<vmem>>, vector<1x128xf32>
    %6 = vector.broadcast %5 : vector<1x128xf32> to vector<256x128xf32>
    %7 = arith.addf %4, %6 : vector<256x128xf32>
    %cst = arith.constant 0.000000e+00 : f32
    %8 = vector.broadcast %cst : f32 to vector<256x128xf32>
    %9 = arith.maximumf %7, %8 : vector<256x128xf32>
    %c0_5 = arith.constant 0 : index
    %c0_6 = arith.constant 0 : index
    %10 = vector.load %arg4[%c0_5, %c0_6] : memref<128x128xf32, #tpu.memory_space<vmem>>, vector<128x128xf32>
    %cst_7 = arith.constant dense<0.000000e+00> : vector<256x128xf32>
    %11 = tpu.matmul %9, %10, %cst_7 {dimension_numbers = #tpu.dot_dimension_numbers<[1], [0], [0], [1], [0, 0, 1, 1], [], []>} : vector<256x128xf32>, vector<128x128xf32>, vector<256x128xf32> -> vector<256x128xf32>
    %c0_8 = arith.constant 0 : index
    %c0_9 = arith.constant 0 : index
    %12 = vector.load %arg5[%c0_8, %c0_9] : memref<1x128xf32, #tpu.memory_space<vmem>>, vector<1x128xf32>
    %13 = vector.broadcast %12 : vector<1x128xf32> to vector<256x128xf32>
    %14 = arith.addf %11, %13 : vector<256x128xf32>
    %cst_10 = arith.constant 0.000000e+00 : f32
    %15 = vector.broadcast %cst_10 : f32 to vector<256x128xf32>
    %16 = arith.maximumf %14, %15 : vector<256x128xf32>
    %c0_11 = arith.constant 0 : index
    %c0_12 = arith.constant 0 : index
    %17 = vector.load %arg6[%c0_11, %c0_12] : memref<128x128xf32, #tpu.memory_space<vmem>>, vector<128x128xf32>
    %cst_13 = arith.constant dense<0.000000e+00> : vector<256x128xf32>
    %18 = tpu.matmul %16, %17, %cst_13 {dimension_numbers = #tpu.dot_dimension_numbers<[1], [0], [0], [1], [0, 0, 1, 1], [], []>} : vector<256x128xf32>, vector<128x128xf32>, vector<256x128xf32> -> vector<256x128xf32>
    %c0_14 = arith.constant 0 : index
    %c0_15 = arith.constant 0 : index
    %19 = vector.load %arg7[%c0_14, %c0_15] : memref<1x128xf32, #tpu.memory_space<vmem>>, vector<1x128xf32>
    %20 = vector.broadcast %19 : vector<1x128xf32> to vector<256x128xf32>
    %21 = arith.addf %18, %20 : vector<256x128xf32>
    %cst_16 = arith.constant 0.000000e+00 : f32
    %22 = vector.broadcast %cst_16 : f32 to vector<256x128xf32>
    %23 = arith.maximumf %21, %22 : vector<256x128xf32>
    %c0_17 = arith.constant 0 : index
    %c0_18 = arith.constant 0 : index
    %24 = vector.load %arg8[%c0_17, %c0_18] : memref<128x100xf32, #tpu.memory_space<vmem>>, vector<128x100xf32>
    %cst_19 = arith.constant dense<0.000000e+00> : vector<256x100xf32>
    %25 = tpu.matmul %23, %24, %cst_19 {dimension_numbers = #tpu.dot_dimension_numbers<[1], [0], [0], [1], [0, 0, 1, 1], [], []>} : vector<256x128xf32>, vector<128x100xf32>, vector<256x100xf32> -> vector<256x100xf32>
    %c0_20 = arith.constant 0 : index
    %c0_21 = arith.constant 0 : index
    %26 = vector.load %arg9[%c0_20, %c0_21] : memref<1x100xf32, #tpu.memory_space<vmem>>, vector<1x100xf32>
    %27 = vector.broadcast %26 : vector<1x100xf32> to vector<256x100xf32>
    %28 = arith.addf %25, %27 : vector<256x100xf32>
    %c0_22 = arith.constant 0 : index
    %c0_23 = arith.constant 0 : index
    %29 = vector.load %arg10[%c0_22, %c0_23] : memref<256x100xf32, #tpu.memory_space<vmem>>, vector<256x100xf32>
    tpu.vector_store %arg10[%c0_22, %c0_23], %28 {strides = array<i32>} : memref<256x100xf32, #tpu.memory_space<vmem>>, vector<256x100xf32>,
    return
  }
  func.func @transform_0(%arg0: i32) -> (i32, i32) {
    %c0_i32 = arith.constant 0 : i32
    %c0_i32_0 = arith.constant 0 : i32
    return %arg0, %c0_i32 : i32, i32
  }
  func.func @transform_1(%arg0: i32) -> (i32, i32) {
    %c0_i32 = arith.constant 0 : i32
    %c0_i32_0 = arith.constant 0 : i32
    %c0_i32_1 = arith.constant 0 : i32
    return %c0_i32, %c0_i32_0 : i32, i32
  }
  func.func @transform_2(%arg0: i32) -> (i32, i32) {
    %c0_i32 = arith.constant 0 : i32
    %c0_i32_0 = arith.constant 0 : i32
    %c0_i32_1 = arith.constant 0 : i32
    return %c0_i32, %c0_i32_0 : i32, i32
  }
  func.func @transform_3(%arg0: i32) -> (i32, i32) {
    %c0_i32 = arith.constant 0 : i32
    %c0_i32_0 = arith.constant 0 : i32
    %c0_i32_1 = arith.constant 0 : i32
    return %c0_i32, %c0_i32_0 : i32, i32
  }
  func.func @transform_4(%arg0: i32) -> (i32, i32) {
    %c0_i32 = arith.constant 0 : i32
    %c0_i32_0 = arith.constant 0 : i32
    %c0_i32_1 = arith.constant 0 : i32
    return %c0_i32, %c0_i32_0 : i32, i32
  }
  func.func @transform_5(%arg0: i32) -> (i32, i32) {
    %c0_i32 = arith.constant 0 : i32
    %c0_i32_0 = arith.constant 0 : i32
    %c0_i32_1 = arith.constant 0 : i32
    return %c0_i32, %c0_i32_0 : i32, i32
  }
  func.func @transform_6(%arg0: i32) -> (i32, i32) {
    %c0_i32 = arith.constant 0 : i32
    %c0_i32_0 = arith.constant 0 : i32
    %c0_i32_1 = arith.constant 0 : i32
    return %c0_i32, %c0_i32_0 : i32, i32
  }
  func.func @transform_7(%arg0: i32) -> (i32, i32) {
    %c0_i32 = arith.constant 0 : i32
    %c0_i32_0 = arith.constant 0 : i32
    %c0_i32_1 = arith.constant 0 : i32
    return %c0_i32, %c0_i32_0 : i32, i32
  }
  func.func @transform_8(%arg0: i32) -> (i32, i32) {
    %c0_i32 = arith.constant 0 : i32
    %c0_i32_0 = arith.constant 0 : i32
    %c0_i32_1 = arith.constant 0 : i32
    return %c0_i32, %c0_i32_0 : i32, i32
  }
  func.func @transform_9(%arg0: i32) -> (i32, i32) {
    %c0_i32 = arith.constant 0 : i32
    %c0_i32_0 = arith.constant 0 : i32
    return %arg0, %c0_i32 : i32, i32
  }
}

</mosaic_0001>

<llo_original>
// kernel: tpu_custom_call.1
$region0: #{tpu_custom_call.1}
  #allocation0 [shape = 'u32[]', space=smem, size = 0x4, offset = 0x4, fixed_abs, tag = 'smem constant byte address 0x4 - core index']
  #allocation1 [shape = 'u32[144,128]{1,0:T(1,128)}', space=vmem, size = 0x12000, scoped, tag = 'internal scratch']
  %s0 = inlined_call_operand.vmem [shape: f32[512,1], index: 0, kind: input, shape index: {}]
  %s1 = inlined_call_operand.vmem [shape: f32[1,128], index: 1, kind: input, shape index: {}]
  %s2 = inlined_call_operand.vmem [shape: f32[1,128], index: 2, kind: input, shape index: {}]
  %s3 = inlined_call_operand.vmem [shape: f32[128,128], index: 3, kind: input, shape index: {}]
  %s4 = inlined_call_operand.vmem [shape: f32[1,128], index: 4, kind: input, shape index: {}]
  %s5 = inlined_call_operand.vmem [shape: f32[128,128], index: 5, kind: input, shape index: {}]
  %s6 = inlined_call_operand.vmem [shape: f32[1,128], index: 6, kind: input, shape index: {}]
  %s7 = inlined_call_operand.vmem [shape: f32[128,100], index: 7, kind: input, shape index: {}]
  %s8 = inlined_call_operand.vmem [shape: f32[1,100], index: 8, kind: input, shape index: {}]
  %s9 = inlined_call_operand.vmem [shape: f32[512,100], index: 9, kind: output, shape index: {}]
  %s10 = sld [smem:[#allocation0]]
  $region69: #{tpu_custom_call.1} parent=0
    _
  %s12 = ssub.s32 1, %s10
  %s13 = scalar_select 0, %s12, %s10
  loop: start=0, step=1, limit=4
  $region2: #{tpu_custom_call.1} parent=0 // loop_pre_header
    _
  $region3: #{tpu_custom_call.1} parent=0 // loop_header
    %s15 = sphi 0, %s19
    %p16 = scmp.ge.s32.totalorder %s15, 4
    %s25 = sphi 0, %s27
    %s28 = sphi 0, %s25
    %s29 = sphi 0, %s28
    %s45 = sphi 0, %s29
    %s49 = sphi 0, %s49
    %s51 = sphi 0, %s49
    %s52 = sphi 0, %s51
    %s66 = sphi 0, %s52
    %s70 = sphi 0, %s70
    %s72 = sphi 0, %s70
    %s73 = sphi 0, %s72
    %s87 = sphi 0, %s73
    %s91 = sphi 0, %s91
    %s93 = sphi 0, %s91
    %s94 = sphi 0, %s93
    %s108 = sphi 0, %s94
    %s112 = sphi 0, %s112
    %s114 = sphi 0, %s112
    %s115 = sphi 0, %s114
    %s129 = sphi 0, %s115
    %s133 = sphi 0, %s133
    %s135 = sphi 0, %s133
    %s136 = sphi 0, %s135
    %s150 = sphi 0, %s136
    %s154 = sphi 0, %s154
    %s156 = sphi 0, %s154
    %s157 = sphi 0, %s156
    %s171 = sphi 0, %s157
    %s175 = sphi 0, %s175
    %s177 = sphi 0, %s175
    %s178 = sphi 0, %s177
    %s192 = sphi 0, %s178
    %s196 = sphi 0, %s196
    %s198 = sphi 0, %s196
    %s199 = sphi 0, %s198
    %s213 = sphi 0, %s199
    %s219 = sphi 0, %s221
    %s222 = sphi 0, %s219
    %s223 = sphi 0, %s222
    %s239 = sphi 0, %s223
  $region4: #{tpu_custom_call.1} parent=0 // loop_header_branch
    %18 = sbr.rel (%p16) target = $region8
  $region5: #{tpu_custom_call.1} parent=0 // loop_body
    %s20 = ssub.s32 %s15, 1
    %s21 = ssub.s32 %s15, 2
    %s22 = sadd.s32 %s15, 1
    %s23 = ssub.s32 %s15, %s22
    %p24 = scmp.eq.s32.totalorder %s23, 0
    %s26 = sadd.s32 %s25, 1
    %s27 = scalar_select %p24, %s25, %s26
    %p30 = pneg %p24
    %p31 = scmp.eq.s32.totalorder %s15, 1
    %p32 = por %p30, %p31
    %p33 = scmp.ne.s32.totalorder %s25, %s28
    %p34 = scmp.eq.s32.totalorder %s15, 0
    %p35 = por %p33, %p34
    %p36 = scmp.ne.s32.totalorder %s25, %s28
    %p37 = scmp.eq.s32.totalorder %s20, 1
    %p38 = por %p36, %p37
    %p39 = scmp.ne.s32.totalorder %s28, %s29
    %p40 = scmp.eq.s32.totalorder %s20, 0
    %p41 = por %p39, %p40
    %p42 = scmp.ne.s32.totalorder %s28, %s29
    %p43 = scmp.eq.s32.totalorder %s21, 1
    %p44 = por %p42, %p43
    %p46 = scmp.ne.s32.totalorder %s29, %s45
    %p47 = scmp.eq.s32.totalorder %s21, 0
    %p48 = por %p46, %p47
    %s50 = sadd.s32 %s49, 1
    %p53 = scmp.eq.s32.totalorder %s15, 1
    %p54 = scmp.ne.s32.totalorder %s49, %s51
    %p55 = scmp.eq.s32.totalorder %s15, 0
    %p56 = por %p54, %p55
    %p57 = scmp.ne.s32.totalorder %s49, %s51
    %p58 = scmp.eq.s32.totalorder %s20, 1
    %p59 = por %p57, %p58
    %p60 = scmp.ne.s32.totalorder %s51, %s52
    %p61 = scmp.eq.s32.totalorder %s20, 0
    %p62 = por %p60, %p61
    %p63 = scmp.ne.s32.totalorder %s51, %s52
    %p64 = scmp.eq.s32.totalorder %s21, 1
    %p65 = por %p63, %p64
    %p67 = scmp.ne.s32.totalorder %s52, %s66
    %p68 = scmp.eq.s32.totalorder %s21, 0
    %p69 = por %p67, %p68
    %s71 = sadd.s32 %s70, 1
    %p74 = scmp.eq.s32.totalorder %s15, 1
    %p75 = scmp.ne.s32.totalorder %s70, %s72
    %p76 = scmp.eq.s32.totalorder %s15, 0
    %p77 = por %p75, %p76
    %p78 = scmp.ne.s32.totalorder %s70, %s72
    %p79 = scmp.eq.s32.totalorder %s20, 1
    %p80 = por %p78, %p79
    %p81 = scmp.ne.s32.totalorder %s72, %s73
    %p82 = scmp.eq.s32.totalorder %s20, 0
    %p83 = por %p81, %p82
    %p84 = scmp.ne.s32.totalorder %s72, %s73
    %p85 = scmp.eq.s32.totalorder %s21, 1
    %p86 = por %p84, %p85
    %p88 = scmp.ne.s32.totalorder %s73, %s87
    %p89 = scmp.eq.s32.totalorder %s21, 0
    %p90 = por %p88, %p89
    %s92 = sadd.s32 %s91, 1
    %p95 = scmp.eq.s32.totalorder %s15, 1
    %p96 = scmp.ne.s32.totalorder %s91, %s93
    %p97 = scmp.eq.s32.totalorder %s15, 0
    %p98 = por %p96, %p97
    %p99 = scmp.ne.s32.totalorder %s91, %s93
    %p100 = scmp.eq.s32.totalorder %s20, 1
    %p101 = por %p99, %p100
    %p102 = scmp.ne.s32.totalorder %s93, %s94
    %p103 = scmp.eq.s32.totalorder %s20, 0
    %p104 = por %p102, %p103
    %p105 = scmp.ne.s32.totalorder %s93, %s94
    %p106 = scmp.eq.s32.totalorder %s21, 1
    %p107 = por %p105, %p106
    %p109 = scmp.ne.s32.totalorder %s94, %s108
    %p110 = scmp.eq.s32.totalorder %s21, 0
    %p111 = por %p109, %p110
    %s113 = sadd.s32 %s112, 1
    %p116 = scmp.eq.s32.totalorder %s15, 1
    %p117 = scmp.ne.s32.totalorder %s112, %s114
    %p118 = scmp.eq.s32.totalorder %s15, 0
    %p119 = por %p117, %p118
    %p120 = scmp.ne.s32.totalorder %s112, %s114
    %p121 = scmp.eq.s32.totalorder %s20, 1
    %p122 = por %p120, %p121
    %p123 = scmp.ne.s32.totalorder %s114, %s115
    %p124 = scmp.eq.s32.totalorder %s20, 0
    %p125 = por %p123, %p124
    %p126 = scmp.ne.s32.totalorder %s114, %s115
    %p127 = scmp.eq.s32.totalorder %s21, 1
    %p128 = por %p126, %p127
    %p130 = scmp.ne.s32.totalorder %s115, %s129
    %p131 = scmp.eq.s32.totalorder %s21, 0
    %p132 = por %p130, %p131
    %s134 = sadd.s32 %s133, 1
    %p137 = scmp.eq.s32.totalorder %s15, 1
    %p138 = scmp.ne.s32.totalorder %s133, %s135
    %p139 = scmp.eq.s32.totalorder %s15, 0
    %p140 = por %p138, %p139
    %p141 = scmp.ne.s32.totalorder %s133, %s135
    %p142 = scmp.eq.s32.totalorder %s20, 1
    %p143 = por %p141, %p142
    %p144 = scmp.ne.s32.totalorder %s135, %s136
    %p145 = scmp.eq.s32.totalorder %s20, 0
    %p146 = por %p144, %p145
    %p147 = scmp.ne.s32.totalorder %s135, %s136
    %p148 = scmp.eq.s32.totalorder %s21, 1
    %p149 = por %p147, %p148
    %p151 = scmp.ne.s32.totalorder %s136, %s150
    %p152 = scmp.eq.s32.totalorder %s21, 0
    %p153 = por %p151, %p152
    %s155 = sadd.s32 %s154, 1
    %p158 = scmp.eq.s32.totalorder %s15, 1
    %p159 = scmp.ne.s32.totalorder %s154, %s156
    %p160 = scmp.eq.s32.totalorder %s15, 0
    %p161 = por %p159, %p160
    %p162 = scmp.ne.s32.totalorder %s154, %s156
    %p163 = scmp.eq.s32.totalorder %s20, 1
    %p164 = por %p162, %p163
    %p165 = scmp.ne.s32.totalorder %s156, %s157
    %p166 = scmp.eq.s32.totalorder %s20, 0
    %p167 = por %p165, %p166
    %p168 = scmp.ne.s32.totalorder %s156, %s157
    %p169 = scmp.eq.s32.totalorder %s21, 1
    %p170 = por %p168, %p169
    %p172 = scmp.ne.s32.totalorder %s157, %s171
    %p173 = scmp.eq.s32.totalorder %s21, 0
    %p174 = por %p172, %p173
    %s176 = sadd.s32 %s175, 1
    %p179 = scmp.eq.s32.totalorder %s15, 1
    %p180 = scmp.ne.s32.totalorder %s175, %s177
    %p181 = scmp.eq.s32.totalorder %s15, 0
    %p182 = por %p180, %p181
    %p183 = scmp.ne.s32.totalorder %s175, %s177
    %p184 = scmp.eq.s32.totalorder %s20, 1
    %p185 = por %p183, %p184
    %p186 = scmp.ne.s32.totalorder %s177, %s178
    %p187 = scmp.eq.s32.totalorder %s20, 0
    %p188 = por %p186, %p187
    %p189 = scmp.ne.s32.totalorder %s177, %s178
    %p190 = scmp.eq.s32.totalorder %s21, 1
    %p191 = por %p189, %p190
    %p193 = scmp.ne.s32.totalorder %s178, %s192
    %p194 = scmp.eq.s32.totalorder %s21, 0
    %p195 = por %p193, %p194
    %s197 = sadd.s32 %s196, 1
    %p200 = scmp.eq.s32.totalorder %s15, 1
    %p201 = scmp.ne.s32.totalorder %s196, %s198
    %p202 = scmp.eq.s32.totalorder %s15, 0
    %p203 = por %p201, %p202
    %p204 = scmp.ne.s32.totalorder %s196, %s198
    %p205 = scmp.eq.s32.totalorder %s20, 1
    %p206 = por %p204, %p205
    %p207 = scmp.ne.s32.totalorder %s198, %s199
    %p208 = scmp.eq.s32.totalorder %s20, 0
    %p209 = por %p207, %p208
    %p210 = scmp.ne.s32.totalorder %s198, %s199
    %p211 = scmp.eq.s32.totalorder %s21, 1
    %p212 = por %p210, %p211
    %p214 = scmp.ne.s32.totalorder %s199, %s213
    %p215 = scmp.eq.s32.totalorder %s21, 0
    %p216 = por %p214, %p215
    %s217 = ssub.s32 %s15, %s22
    %p218 = scmp.eq.s32.totalorder %s217, 0
    %s220 = sadd.s32 %s219, 1
    %s221 = scalar_select %p218, %s219, %s220
    %p224 = pneg %p218
    %p225 = scmp.eq.s32.totalorder %s15, 1
    %p226 = por %p224, %p225
    %p227 = scmp.ne.s32.totalorder %s219, %s222
    %p228 = scmp.eq.s32.totalorder %s15, 0
    %p229 = por %p227, %p228
    %p230 = scmp.ne.s32.totalorder %s219, %s222
    %p231 = scmp.eq.s32.totalorder %s20, 1
    %p232 = por %p230, %p231
    %p233 = scmp.ne.s32.totalorder %s222, %s223
    %p234 = scmp.eq.s32.totalorder %s20, 0
    %p235 = por %p233, %p234
    %p236 = scmp.ne.s32.totalorder %s222, %s223
    %p237 = scmp.eq.s32.totalorder %s21, 1
    %p238 = por %p236, %p237
    %p240 = scmp.ne.s32.totalorder %s223, %s239
    %p241 = scmp.eq.s32.totalorder %s21, 0
    %p242 = por %p240, %p241
    %p243 = scmp.le.s32.totalorder 1, %s15
    %p244 = scmp.lt.s32.totalorder %s15, 3
    %p245 = pnand %p243, %p244
    %p246 = pneg %p245
    // Predicated region
    $region9: #{tpu_custom_call.1} parent=5 // pred_check
      _
    $region10: #{tpu_custom_call.1} parent=5 // pred_check_branch
      %248 = sbr.rel (%p245) target = $region12
    $region11: #{tpu_custom_call.1} parent=5 // pred_region
      %s249 = ssub.s32 %s15, 1
      // Predicated region
      $region13: #{tpu_custom_call.1} parent=11 // pred_check
        %p250 = pneg %p62
      $region14: #{tpu_custom_call.1} parent=11 // pred_check_branch
        %252 = sbr.rel (%p250) target = $region16
      $region15: #{tpu_custom_call.1} parent=11 // pred_region
        _
      $region16: #{tpu_custom_call.1} parent=11 // pred_fallthru
        _
      // Predicated region
      $region17: #{tpu_custom_call.1} parent=11 // pred_check
        %p253 = pneg %p83
      $region18: #{tpu_custom_call.1} parent=11 // pred_check_branch
        %255 = sbr.rel (%p253) target = $region20
      $region19: #{tpu_custom_call.1} parent=11 // pred_region
        _
      $region20: #{tpu_custom_call.1} parent=11 // pred_fallthru
        _
      // Predicated region
      $region21: #{tpu_custom_call.1} parent=11 // pred_check
        %p256 = pneg %p104
      $region22: #{tpu_custom_call.1} parent=11 // pred_check_branch
        %258 = sbr.rel (%p256) target = $region24
      $region23: #{tpu_custom_call.1} parent=11 // pred_region
        _
      $region24: #{tpu_custom_call.1} parent=11 // pred_fallthru
        _
      // Predicated region
      $region25: #{tpu_custom_call.1} parent=11 // pred_check
        %p259 = pneg %p125
      $region26: #{tpu_custom_call.1} parent=11 // pred_check_branch
        %261 = sbr.rel (%p259) target = $region28
      $region27: #{tpu_custom_call.1} parent=11 // pred_region
        _
      $region28: #{tpu_custom_call.1} parent=11 // pred_fallthru
        _
      // Predicated region
      $region29: #{tpu_custom_call.1} parent=11 // pred_check
        %p262 = pneg %p146
      $region30: #{tpu_custom_call.1} parent=11 // pred_check_branch
        %264 = sbr.rel (%p262) target = $region32
      $region31: #{tpu_custom_call.1} parent=11 // pred_region
        _
      $region32: #{tpu_custom_call.1} parent=11 // pred_fallthru
        _
      // Predicated region
      $region33: #{tpu_custom_call.1} parent=11 // pred_check
        %p265 = pneg %p167
      $region34: #{tpu_custom_call.1} parent=11 // pred_check_branch
        %267 = sbr.rel (%p265) target = $region36
      $region35: #{tpu_custom_call.1} parent=11 // pred_region
        _
      $region36: #{tpu_custom_call.1} parent=11 // pred_fallthru
        _
      // Predicated region
      $region37: #{tpu_custom_call.1} parent=11 // pred_check
        %p268 = pneg %p188
      $region38: #{tpu_custom_call.1} parent=11 // pred_check_branch
        %270 = sbr.rel (%p268) target = $region40
      $region39: #{tpu_custom_call.1} parent=11 // pred_region
        _
      $region40: #{tpu_custom_call.1} parent=11 // pred_fallthru
        _
      // Predicated region
      $region41: #{tpu_custom_call.1} parent=11 // pred_check
        %p271 = pneg %p209
      $region42: #{tpu_custom_call.1} parent=11 // pred_check_branch
        %273 = sbr.rel (%p271) target = $region44
      $region43: #{tpu_custom_call.1} parent=11 // pred_region
        _
      $region44: #{tpu_custom_call.1} parent=11 // pred_fallthru
        _
    $region12: #{tpu_custom_call.1} parent=5 // pred_fallthru
      _
    %p274 = scmp.lt.s32.totalorder %s15, 2
    // Predicated region
    $region45: #{tpu_custom_call.1} parent=5 // pred_check
      %p275 = pneg %p274
    $region46: #{tpu_custom_call.1} parent=5 // pred_check_branch
      %277 = sbr.rel (%p275) target = $region48
    $region47: #{tpu_custom_call.1} parent=5 // pred_region
      // Predicated region
      $region49: #{tpu_custom_call.1} parent=47 // pred_check
        %p278 = pneg %p35
      $region50: #{tpu_custom_call.1} parent=47 // pred_check_branch
        %280 = sbr.rel (%p278) target = $region52
      $region51: #{tpu_custom_call.1} parent=47 // pred_region
        %s281 = smul.u32 32, %s15
        %p282 = scmp.lt.s32.totalorder %s281, 63
        %s283 = scalar_select %p282, %s281, 63
        %s284 = smul.addr %s283, 8
        %s285 = scalar_lea.vmem %s0, %s284
        %s286 = smul.u32 32, %s15
      $region52: #{tpu_custom_call.1} parent=47 // pred_fallthru
        _
    $region48: #{tpu_custom_call.1} parent=5 // pred_fallthru
      _
    %p287 = scmp.le.s32.totalorder 1, %s15
    %p288 = scmp.lt.s32.totalorder %s15, 3
    %p289 = pnand %p287, %p288
    %p290 = pneg %p289
    // Predicated region
    $region53: #{tpu_custom_call.1} parent=5 // pred_check
      _
    $region54: #{tpu_custom_call.1} parent=5 // pred_check_branch
      %292 = sbr.rel (%p289) target = $region56
    $region55: #{tpu_custom_call.1} parent=5 // pred_region
      %s293 = ssub.s32 %s15, 1
      %s294 = smul.u32 32, %s20
      %p295 = scmp.lt.s32.totalorder %s294, 63
      %s296 = scalar_select %p295, %s294, 63
      %s297 = smul.addr %s296, 8
      %s298 = scalar_lea.vmem %s0, %s297
      %p299 = pneg %p41
      %p300 = pneg %p38
      %p301 = pneg %p62
      %p302 = pneg %p59
      %p303 = pneg %p83
      %p304 = pneg %p80
      %p305 = pneg %p104
      %p306 = pneg %p101
      %p307 = pneg %p125
      %p308 = pneg %p122
      %p309 = pneg %p146
      %p310 = pneg %p143
      %p311 = pneg %p167
      %p312 = pneg %p164
      %p313 = pneg %p188
      %p314 = pneg %p185
      %p315 = pneg %p209
      %p316 = pneg %p206
      %p317 = pneg %p235
      %p318 = pneg %p232
      %s319 = smul.u32 32, %s20
      %p320 = scmp.lt.s32.totalorder %s319, 63
      %s321 = scalar_select %p320, %s319, 63
      %s322 = smul.addr %s321, 8
      %s323 = scalar_lea.vmem %s9, %s322
      %s324 = smul.u32 32, %s20
      %p325 = scmp.lt.s32.totalorder %s324, 63
      %s326 = scalar_select %p325, %s324, 63
      %s327 = smul.addr %s326, 8
      %s328 = scalar_lea.vmem %s0, %s327
      %s329 = smul.u32 32, %s20
      %s330 = smul.u32 32, %s20
      %p331 = scmp.lt.s32.totalorder %s330, 63
      %s332 = scalar_select %p331, %s330, 63
      %s333 = smul.addr %s332, 8
      %s334 = scalar_lea.vmem %s9, %s333
      %s335 = smul.u32 32, %s20
      %v336 = vld [vmem:[%s328] sm:$0xff]
      %v337 = vld [vmem:[%s328 + $0x8] sm:$0xff]
      %v338 = vld [vmem:[%s328 + $0x10] sm:$0xff]
      %v339 = vld [vmem:[%s328 + $0x18] sm:$0xff]
      %v340 = vld [vmem:[%s328 + $0x20] sm:$0xff]
      %v341 = vld [vmem:[%s328 + $0x28] sm:$0xff]
      %v342 = vld [vmem:[%s328 + $0x30] sm:$0xff]
      %v343 = vld [vmem:[%s328 + $0x38] sm:$0xff]
      %v344 = vld [vmem:[%s328 + $0x40] sm:$0xff]
      %v345 = vld [vmem:[%s328 + $0x48] sm:$0xff]
      %v346 = vld [vmem:[%s328 + $0x50] sm:$0xff]
      %v347 = vld [vmem:[%s328 + $0x58] sm:$0xff]
      %v348 = vld [vmem:[%s328 + $0x60] sm:$0xff]
      %v349 = vld [vmem:[%s328 + $0x68] sm:$0xff]
      %v350 = vld [vmem:[%s328 + $0x70] sm:$0xff]
      %v351 = vld [vmem:[%s328 + $0x78] sm:$0xff]
      %v352 = vld [vmem:[%s328 + $0x80] sm:$0xff]
      %v353 = vld [vmem:[%s328 + $0x88] sm:$0xff]
      %v354 = vld [vmem:[%s328 + $0x90] sm:$0xff]
      %v355 = vld [vmem:[%s328 + $0x98] sm:$0xff]
      %v356 = vld [vmem:[%s328 + $0xa0] sm:$0xff]
      %v357 = vld [vmem:[%s328 + $0xa8] sm:$0xff]
      %v358 = vld [vmem:[%s328 + $0xb0] sm:$0xff]
      %v359 = vld [vmem:[%s328 + $0xb8] sm:$0xff]
      %v360 = vld [vmem:[%s328 + $0xc0] sm:$0xff]
      %v361 = vld [vmem:[%s328 + $0xc8] sm:$0xff]
      %v362 = vld [vmem:[%s328 + $0xd0] sm:$0xff]
      %v363 = vld [vmem:[%s328 + $0xd8] sm:$0xff]
      %v364 = vld [vmem:[%s328 + $0xe0] sm:$0xff]
      %v365 = vld [vmem:[%s328 + $0xe8] sm:$0xff]
      %v366 = vld [vmem:[%s328 + $0xf0] sm:$0xff]
      %v367 = vld [vmem:[%s328 + $0xf8] sm:$0xff]
      %v368 = vld [vmem:[%s1] sm:$0x1]
      %370 = vset.pattern.permute.xlu0 0
      %371 = vperm.xlu0 %370, %v336
      %v372 = vpop.permute.xlu0 %371
      %375 = vset.pattern.permute.xlu0 0
      %376 = vperm.xlu0 %375, %v337
      %v377 = vpop.permute.xlu0 %376
      %380 = vset.pattern.permute.xlu0 0
      %381 = vperm.xlu0 %380, %v338
      %v382 = vpop.permute.xlu0 %381
      %385 = vset.pattern.permute.xlu0 0
      %386 = vperm.xlu0 %385, %v339
      %v387 = vpop.permute.xlu0 %386
      %390 = vset.pattern.permute.xlu0 0
      %391 = vperm.xlu0 %390, %v340
      %v392 = vpop.permute.xlu0 %391
      %395 = vset.pattern.permute.xlu0 0
      %396 = vperm.xlu0 %395, %v341
      %v397 = vpop.permute.xlu0 %396
      %400 = vset.pattern.permute.xlu0 0
      %401 = vperm.xlu0 %400, %v342
      %v402 = vpop.permute.xlu0 %401
      %405 = vset.pattern.permute.xlu0 0
      %406 = vperm.xlu0 %405, %v343
      %v407 = vpop.permute.xlu0 %406
      %410 = vset.pattern.permute.xlu0 0
      %411 = vperm.xlu0 %410, %v344
      %v412 = vpop.permute.xlu0 %411
      %415 = vset.pattern.permute.xlu0 0
      %416 = vperm.xlu0 %415, %v345
      %v417 = vpop.permute.xlu0 %416
      %420 = vset.pattern.permute.xlu0 0
      %421 = vperm.xlu0 %420, %v346
      %v422 = vpop.permute.xlu0 %421
      %425 = vset.pattern.permute.xlu0 0
      %426 = vperm.xlu0 %425, %v347
      %v427 = vpop.permute.xlu0 %426
      %430 = vset.pattern.permute.xlu0 0
      %431 = vperm.xlu0 %430, %v348
      %v432 = vpop.permute.xlu0 %431
      %435 = vset.pattern.permute.xlu0 0
      %436 = vperm.xlu0 %435, %v349
      %v437 = vpop.permute.xlu0 %436
      %440 = vset.pattern.permute.xlu0 0
      %441 = vperm.xlu0 %440, %v350
      %v442 = vpop.permute.xlu0 %441
      %445 = vset.pattern.permute.xlu0 0
      %446 = vperm.xlu0 %445, %v351
      %v447 = vpop.permute.xlu0 %446
      %450 = vset.pattern.permute.xlu0 0
      %451 = vperm.xlu0 %450, %v352
      %v452 = vpop.permute.xlu0 %451
      %455 = vset.pattern.permute.xlu0 0
      %456 = vperm.xlu0 %455, %v353
      %v457 = vpop.permute.xlu0 %456
      %460 = vset.pattern.permute.xlu0 0
      %461 = vperm.xlu0 %460, %v354
      %v462 = vpop.permute.xlu0 %461
      %465 = vset.pattern.permute.xlu0 0
      %466 = vperm.xlu0 %465, %v355
      %v467 = vpop.permute.xlu0 %466
      %470 = vset.pattern.permute.xlu0 0
      %471 = vperm.xlu0 %470, %v356
      %v472 = vpop.permute.xlu0 %471
      %475 = vset.pattern.permute.xlu0 0
      %476 = vperm.xlu0 %475, %v357
      %v477 = vpop.permute.xlu0 %476
      %480 = vset.pattern.permute.xlu0 0
      %481 = vperm.xlu0 %480, %v358
      %v482 = vpop.permute.xlu0 %481
      %485 = vset.pattern.permute.xlu0 0
      %486 = vperm.xlu0 %485, %v359
      %v487 = vpop.permute.xlu0 %486
      %490 = vset.pattern.permute.xlu0 0
      %491 = vperm.xlu0 %490, %v360
      %v492 = vpop.permute.xlu0 %491
      %495 = vset.pattern.permute.xlu0 0
      %496 = vperm.xlu0 %495, %v361
      %v497 = vpop.permute.xlu0 %496
      %500 = vset.pattern.permute.xlu0 0
      %501 = vperm.xlu0 %500, %v362
      %v502 = vpop.permute.xlu0 %501
      %505 = vset.pattern.permute.xlu0 0
      %506 = vperm.xlu0 %505, %v363
      %v507 = vpop.permute.xlu0 %506
      %510 = vset.pattern.permute.xlu0 0
      %511 = vperm.xlu0 %510, %v364
      %v512 = vpop.permute.xlu0 %511
      %515 = vset.pattern.permute.xlu0 0
      %516 = vperm.xlu0 %515, %v365
      %v517 = vpop.permute.xlu0 %516
      %520 = vset.pattern.permute.xlu0 0
      %521 = vperm.xlu0 %520, %v366
      %v522 = vpop.permute.xlu0 %521
      %525 = vset.pattern.permute.xlu0 0
      %526 = vperm.xlu0 %525, %v367
      %v527 = vpop.permute.xlu0 %526
      %v530 = vlaneseq
      %v531 = vshrl.u32 %v530, 7
      %v532 = vsub.s32 0, %v531
      %v533 = vrot.slane %v368, %v532
      %v535 = vmul.f32 %v372, %v533
      %v536 = vmul.f32 %v377, %v533
      %v537 = vmul.f32 %v382, %v533
      %v538 = vmul.f32 %v387, %v533
      %v539 = vmul.f32 %v392, %v533
      %v540 = vmul.f32 %v397, %v533
      %v541 = vmul.f32 %v402, %v533
      %v542 = vmul.f32 %v407, %v533
      %v543 = vmul.f32 %v412, %v533
      %v544 = vmul.f32 %v417, %v533
      %v545 = vmul.f32 %v422, %v533
      %v546 = vmul.f32 %v427, %v533
      %v547 = vmul.f32 %v432, %v533
      %v548 = vmul.f32 %v437, %v533
      %v549 = vmul.f32 %v442, %v533
      %v550 = vmul.f32 %v447, %v533
      %v551 = vmul.f32 %v452, %v533
      %v552 = vmul.f32 %v457, %v533
      %v553 = vmul.f32 %v462, %v533
      %v554 = vmul.f32 %v467, %v533
      %v555 = vmul.f32 %v472, %v533
      %v556 = vmul.f32 %v477, %v533
      %v557 = vmul.f32 %v482, %v533
      %v558 = vmul.f32 %v487, %v533
      %v559 = vmul.f32 %v492, %v533
      %v560 = vmul.f32 %v497, %v533
      %v561 = vmul.f32 %v502, %v533
      %v562 = vmul.f32 %v507, %v533
      %v563 = vmul.f32 %v512, %v533
      %v564 = vmul.f32 %v517, %v533
      %v565 = vmul.f32 %v522, %v533
      %v566 = vmul.f32 %v527, %v533
      %v567 = vld [vmem:[%s2] sm:$0x1]
      %v569 = vlaneseq
      %v570 = vshrl.u32 %v569, 7
      %v571 = vsub.s32 0, %v570
      %v572 = vrot.slane %v567, %v571
      %v574 = vadd.f32 %v535, %v572
      %v575 = vadd.f32 %v536, %v572
      %v576 = vadd.f32 %v537, %v572
      %v577 = vadd.f32 %v538, %v572
      %v578 = vadd.f32 %v539, %v572
      %v579 = vadd.f32 %v540, %v572
      %v580 = vadd.f32 %v541, %v572
      %v581 = vadd.f32 %v542, %v572
      %v582 = vadd.f32 %v543, %v572
      %v583 = vadd.f32 %v544, %v572
      %v584 = vadd.f32 %v545, %v572
      %v585 = vadd.f32 %v546, %v572
      %v586 = vadd.f32 %v547, %v572
      %v587 = vadd.f32 %v548, %v572
      %v588 = vadd.f32 %v549, %v572
      %v589 = vadd.f32 %v550, %v572
      %v590 = vadd.f32 %v551, %v572
      %v591 = vadd.f32 %v552, %v572
      %v592 = vadd.f32 %v553, %v572
      %v593 = vadd.f32 %v554, %v572
      %v594 = vadd.f32 %v555, %v572
      %v595 = vadd.f32 %v556, %v572
      %v596 = vadd.f32 %v557, %v572
      %v597 = vadd.f32 %v558, %v572
      %v598 = vadd.f32 %v559, %v572
      %v599 = vadd.f32 %v560, %v572
      %v600 = vadd.f32 %v561, %v572
      %v601 = vadd.f32 %v562, %v572
      %v602 = vadd.f32 %v563, %v572
      %v603 = vadd.f32 %v564, %v572
      %v604 = vadd.f32 %v565, %v572
      %v605 = vadd.f32 %v566, %v572
      %v606 = vmax.f32 %v574, 0.0
      %v607 = vmax.f32 %v575, 0.0
      %v608 = vmax.f32 %v576, 0.0
      %v609 = vmax.f32 %v577, 0.0
      %v610 = vmax.f32 %v578, 0.0
      %v611 = vmax.f32 %v579, 0.0
      %v612 = vmax.f32 %v580, 0.0
      %v613 = vmax.f32 %v581, 0.0
      %v614 = vmax.f32 %v582, 0.0
      %v615 = vmax.f32 %v583, 0.0
      %v616 = vmax.f32 %v584, 0.0
      %v617 = vmax.f32 %v585, 0.0
      %v618 = vmax.f32 %v586, 0.0
      %v619 = vmax.f32 %v587, 0.0
      %v620 = vmax.f32 %v588, 0.0
      %v621 = vmax.f32 %v589, 0.0
      %v622 = vmax.f32 %v590, 0.0
      %v623 = vmax.f32 %v591, 0.0
      %v624 = vmax.f32 %v592, 0.0
      %v625 = vmax.f32 %v593, 0.0
      %v626 = vmax.f32 %v594, 0.0
      %v627 = vmax.f32 %v595, 0.0
      %v628 = vmax.f32 %v596, 0.0
      %v629 = vmax.f32 %v597, 0.0
      %v630 = vmax.f32 %v598, 0.0
      %v631 = vmax.f32 %v599, 0.0
      %v632 = vmax.f32 %v600, 0.0
      %v633 = vmax.f32 %v601, 0.0
      %v634 = vmax.f32 %v602, 0.0
      %v635 = vmax.f32 %v603, 0.0
      %v636 = vmax.f32 %v604, 0.0
      %v637 = vmax.f32 %v605, 0.0
      %v638 = vld [vmem:[%s3] sm:$0xff]
      %v639 = vld [vmem:[%s3 + $0x8] sm:$0xff]
      %v640 = vld [vmem:[%s3 + $0x10] sm:$0xff]
      %v641 = vld [vmem:[%s3 + $0x18] sm:$0xff]
      %v642 = vld [vmem:[%s3 + $0x20] sm:$0xff]
      %v643 = vld [vmem:[%s3 + $0x28] sm:$0xff]
      %v644 = vld [vmem:[%s3 + $0x30] sm:$0xff]
      %v645 = vld [vmem:[%s3 + $0x38] sm:$0xff]
      %v646 = vld [vmem:[%s3 + $0x40] sm:$0xff]
      %v647 = vld [vmem:[%s3 + $0x48] sm:$0xff]
      %v648 = vld [vmem:[%s3 + $0x50] sm:$0xff]
      %v649 = vld [vmem:[%s3 + $0x58] sm:$0xff]
      %v650 = vld [vmem:[%s3 + $0x60] sm:$0xff]
      %v651 = vld [vmem:[%s3 + $0x68] sm:$0xff]
      %v652 = vld [vmem:[%s3 + $0x70] sm:$0xff]
      %v653 = vld [vmem:[%s3 + $0x78] sm:$0xff]
      %v654 = vld [vmem:[%s4] sm:$0x1]
      %v656 = vlaneseq
      %v657 = vshrl.u32 %v656, 7
      %v658 = vsub.s32 0, %v657
      %v659 = vrot.slane %v654, %v658
      %661 = vmatprep.subr.mxu0 0.0
      %662 = vmatpush1.msra.mxu0 %v653
      %663 = vmatprep.subr.mxu0 0.0
      %664 = vmatpush1.msra.mxu0 %v652
      %665 = vmatprep.subr.mxu0 0.0
      %666 = vmatpush1.msra.mxu0 %v651
      %667 = vmatprep.subr.mxu0 0.0
      %668 = vmatpush1.msra.mxu0 %v650
      %669 = vmatprep.subr.mxu0 0.0
      %670 = vmatpush1.msra.mxu0 %v649
      %671 = vmatprep.subr.mxu0 0.0
      %672 = vmatpush1.msra.mxu0 %v648
      %673 = vmatprep.subr.mxu0 0.0
      %674 = vmatpush1.msra.mxu0 %v647
      %675 = vmatprep.subr.mxu0 0.0
      %676 = vmatpush1.msra.mxu0 %v646
      %677 = vmatprep.subr.mxu0 0.0
      %678 = vmatpush1.msra.mxu0 %v645
      %679 = vmatprep.subr.mxu0 0.0
      %680 = vmatpush1.msra.mxu0 %v644
      %681 = vmatprep.subr.mxu0 0.0
      %682 = vmatpush1.msra.mxu0 %v643
      %683 = vmatprep.subr.mxu0 0.0
      %684 = vmatpush1.msra.mxu0 %v642
      %685 = vmatprep.subr.mxu0 0.0
      %686 = vmatpush1.msra.mxu0 %v641
      %687 = vmatprep.subr.mxu0 0.0
      %688 = vmatpush1.msra.mxu0 %v640
      %689 = vmatprep.subr.mxu0 0.0
      %690 = vmatpush1.msra.mxu0 %v639
      %691 = vmatprep.subr.mxu0 0.0
      %692 = vmatpush1.msra.mxu0 %v638
      %693 = vmatprep.subr.mxu0 0.0
      %694 = vmatpush2.msra.mxu0 0.0
      %695 = vmatprep.subr.mxu0 0.0
      %696 = vmatpush2.msra.mxu0 0.0
      %697 = vmatprep.subr.mxu0 0.0
      %698 = vmatpush2.msra.mxu0 0.0
      %699 = vmatprep.subr.mxu0 0.0
      %700 = vmatpush2.msra.mxu0 0.0
      %701 = vmatprep.subr.mxu0 0.0
      %702 = vmatpush2.msra.mxu0 0.0
      %703 = vmatprep.subr.mxu0 0.0
      %704 = vmatpush2.msra.mxu0 0.0
      %705 = vmatprep.subr.mxu0 0.0
      %706 = vmatpush2.msra.mxu0 0.0
      %707 = vmatprep.subr.mxu0 0.0
      %708 = vmatpush2.msra.mxu0 0.0
      %709 = vmatprep.subr.mxu0 0.0
      %710 = vmatpush2.msra.mxu0 0.0
      %711 = vmatprep.subr.mxu0 0.0
      %712 = vmatpush2.msra.mxu0 0.0
      %713 = vmatprep.subr.mxu0 0.0
      %714 = vmatpush2.msra.mxu0 0.0
      %715 = vmatprep.subr.mxu0 0.0
      %716 = vmatpush2.msra.mxu0 0.0
      %717 = vmatprep.subr.mxu0 0.0
      %718 = vmatpush2.msra.mxu0 0.0
      %719 = vmatprep.subr.mxu0 0.0
      %720 = vmatpush2.msra.mxu0 0.0
      %721 = vmatprep.subr.mxu0 0.0
      %722 = vmatpush2.msra.mxu0 0.0
      %723 = vmatprep.subr.mxu0 0.0
      %724 = vmatpush2.msra.mxu0 0.0
      %725 = vmatprep.mubr.f32.mxu0 0.0
      %726 = vmatmul.mubr.f32.gmra.mxu0 %v606
      %v727 = vpop.f32.mrf.mxu0
      %v728 = vadd.f32 %v659, %v727
      %v729 = vpop.f32.mrf.mxu0
      %730 = vmatprep.mubr.f32.mxu0 0.0
      %731 = vmatmul.mubr.f32.gmra.mxu0 %v607
      %v732 = vpop.f32.mrf.mxu0
      %v733 = vadd.f32 %v659, %v732
      %v734 = vpop.f32.mrf.mxu0
      %735 = vmatprep.mubr.f32.mxu0 0.0
      %736 = vmatmul.mubr.f32.gmra.mxu0 %v608
      %v737 = vpop.f32.mrf.mxu0
      %v738 = vadd.f32 %v659, %v737
      %v739 = vpop.f32.mrf.mxu0
      %740 = vmatprep.mubr.f32.mxu0 0.0
      %741 = vmatmul.mubr.f32.gmra.mxu0 %v609
      %v742 = vpop.f32.mrf.mxu0
      %v743 = vadd.f32 %v659, %v742
      %v744 = vpop.f32.mrf.mxu0
      %745 = vmatprep.mubr.f32.mxu0 0.0
      %746 = vmatmul.mubr.f32.gmra.mxu0 %v610
      %v747 = vpop.f32.mrf.mxu0
      %v748 = vadd.f32 %v659, %v747
      %v749 = vpop.f32.mrf.mxu0
      %750 = vmatprep.mubr.f32.mxu0 0.0
      %751 = vmatmul.mubr.f32.gmra.mxu0 %v611
      %v752 = vpop.f32.mrf.mxu0
      %v753 = vadd.f32 %v659, %v752
      %v754 = vpop.f32.mrf.mxu0
      %755 = vmatprep.mubr.f32.mxu0 0.0
      %756 = vmatmul.mubr.f32.gmra.mxu0 %v612
      %v757 = vpop.f32.mrf.mxu0
      %v758 = vadd.f32 %v659, %v757
      %v759 = vpop.f32.mrf.mxu0
      %760 = vmatprep.mubr.f32.mxu0 0.0
      %761 = vmatmul.mubr.f32.gmra.mxu0 %v613
      %v762 = vpop.f32.mrf.mxu0
      %v763 = vadd.f32 %v659, %v762
      %v764 = vpop.f32.mrf.mxu0
      %765 = vmatprep.mubr.f32.mxu0 0.0
      %766 = vmatmul.mubr.f32.gmra.mxu0 %v614
      %v767 = vpop.f32.mrf.mxu0
      %v768 = vadd.f32 %v659, %v767
      %v769 = vpop.f32.mrf.mxu0
      %770 = vmatprep.mubr.f32.mxu0 0.0
      %771 = vmatmul.mubr.f32.gmra.mxu0 %v615
      %v772 = vpop.f32.mrf.mxu0
      %v773 = vadd.f32 %v659, %v772
      %v774 = vpop.f32.mrf.mxu0
      %775 = vmatprep.mubr.f32.mxu0 0.0
      %776 = vmatmul.mubr.f32.gmra.mxu0 %v616
      %v777 = vpop.f32.mrf.mxu0
      %v778 = vadd.f32 %v659, %v777
      %v779 = vpop.f32.mrf.mxu0
      %780 = vmatprep.mubr.f32.mxu0 0.0
      %781 = vmatmul.mubr.f32.gmra.mxu0 %v617
      %v782 = vpop.f32.mrf.mxu0
      %v783 = vadd.f32 %v659, %v782
      %v784 = vpop.f32.mrf.mxu0
      %785 = vmatprep.mubr.f32.mxu0 0.0
      %786 = vmatmul.mubr.f32.gmra.mxu0 %v618
      %v787 = vpop.f32.mrf.mxu0
      %v788 = vadd.f32 %v659, %v787
      %v789 = vpop.f32.mrf.mxu0
      %790 = vmatprep.mubr.f32.mxu0 0.0
      %791 = vmatmul.mubr.f32.gmra.mxu0 %v619
      %v792 = vpop.f32.mrf.mxu0
      %v793 = vadd.f32 %v659, %v792
      %v794 = vpop.f32.mrf.mxu0
      %795 = vmatprep.mubr.f32.mxu0 0.0
      %796 = vmatmul.mubr.f32.gmra.mxu0 %v620
      %v797 = vpop.f32.mrf.mxu0
      %v798 = vadd.f32 %v659, %v797
      %v799 = vpop.f32.mrf.mxu0
      %800 = vmatprep.mubr.f32.mxu0 0.0
      %801 = vmatmul.mubr.f32.gmra.mxu0 %v621
      %v802 = vpop.f32.mrf.mxu0
      %v803 = vadd.f32 %v659, %v802
      %v804 = vpop.f32.mrf.mxu0
      %805 = vmatprep.mubr.f32.mxu0 0.0
      %806 = vmatmul.mubr.f32.gmra.mxu0 %v622
      %v807 = vpop.f32.mrf.mxu0
      %v808 = vadd.f32 %v659, %v807
      %v809 = vpop.f32.mrf.mxu0
      %810 = vmatprep.mubr.f32.mxu0 0.0
      %811 = vmatmul.mubr.f32.gmra.mxu0 %v623
      %v812 = vpop.f32.mrf.mxu0
      %v813 = vadd.f32 %v659, %v812
      %v814 = vpop.f32.mrf.mxu0
      %815 = vmatprep.mubr.f32.mxu0 0.0
      %816 = vmatmul.mubr.f32.gmra.mxu0 %v624
      %v817 = vpop.f32.mrf.mxu0
      %v818 = vadd.f32 %v659, %v817
      %v819 = vpop.f32.mrf.mxu0
      %820 = vmatprep.mubr.f32.mxu0 0.0
      %821 = vmatmul.mubr.f32.gmra.mxu0 %v625
      %v822 = vpop.f32.mrf.mxu0
      %v823 = vadd.f32 %v659, %v822
      %v824 = vpop.f32.mrf.mxu0
      %825 = vmatprep.mubr.f32.mxu0 0.0
      %826 = vmatmul.mubr.f32.gmra.mxu0 %v626
      %v827 = vpop.f32.mrf.mxu0
      %v828 = vadd.f32 %v659, %v827
      %v829 = vpop.f32.mrf.mxu0
      %830 = vmatprep.mubr.f32.mxu0 0.0
      %831 = vmatmul.mubr.f32.gmra.mxu0 %v627
      %v832 = vpop.f32.mrf.mxu0
      %v833 = vadd.f32 %v659, %v832
      %v834 = vpop.f32.mrf.mxu0
      %835 = vmatprep.mubr.f32.mxu0 0.0
      %836 = vmatmul.mubr.f32.gmra.mxu0 %v628
      %v837 = vpop.f32.mrf.mxu0
      %v838 = vadd.f32 %v659, %v837
      %v839 = vpop.f32.mrf.mxu0
      %840 = vmatprep.mubr.f32.mxu0 0.0
      %841 = vmatmul.mubr.f32.gmra.mxu0 %v629
      %v842 = vpop.f32.mrf.mxu0
      %v843 = vadd.f32 %v659, %v842
      %v844 = vpop.f32.mrf.mxu0
      %845 = vmatprep.mubr.f32.mxu0 0.0
      %846 = vmatmul.mubr.f32.gmra.mxu0 %v630
      %v847 = vpop.f32.mrf.mxu0
      %v848 = vadd.f32 %v659, %v847
      %v849 = vpop.f32.mrf.mxu0
      %850 = vmatprep.mubr.f32.mxu0 0.0
      %851 = vmatmul.mubr.f32.gmra.mxu0 %v631
      %v852 = vpop.f32.mrf.mxu0
      %v853 = vadd.f32 %v659, %v852
      %v854 = vpop.f32.mrf.mxu0
      %855 = vmatprep.mubr.f32.mxu0 0.0
      %856 = vmatmul.mubr.f32.gmra.mxu0 %v632
      %v857 = vpop.f32.mrf.mxu0
      %v858 = vadd.f32 %v659, %v857
      %v859 = vpop.f32.mrf.mxu0
      %860 = vmatprep.mubr.f32.mxu0 0.0
      %861 = vmatmul.mubr.f32.gmra.mxu0 %v633
      %v862 = vpop.f32.mrf.mxu0
      %v863 = vadd.f32 %v659, %v862
      %v864 = vpop.f32.mrf.mxu0
      %865 = vmatprep.mubr.f32.mxu0 0.0
      %866 = vmatmul.mubr.f32.gmra.mxu0 %v634
      %v867 = vpop.f32.mrf.mxu0
      %v868 = vadd.f32 %v659, %v867
      %v869 = vpop.f32.mrf.mxu0
      %870 = vmatprep.mubr.f32.mxu0 0.0
      %871 = vmatmul.mubr.f32.gmra.mxu0 %v635
      %v872 = vpop.f32.mrf.mxu0
      %v873 = vadd.f32 %v659, %v872
      %v874 = vpop.f32.mrf.mxu0
      %875 = vmatprep.mubr.f32.mxu0 0.0
      %876 = vmatmul.mubr.f32.gmra.mxu0 %v636
      %v877 = vpop.f32.mrf.mxu0
      %v878 = vadd.f32 %v659, %v877
      %v879 = vpop.f32.mrf.mxu0
      %880 = vmatprep.mubr.f32.mxu0 0.0
      %881 = vmatmul.mubr.f32.gmra.mxu0 %v637
      %v882 = vpop.f32.mrf.mxu0
      %v883 = vadd.f32 %v659, %v882
      %v884 = vpop.f32.mrf.mxu0
      %885 = vdwg.mxu0
      %v886 = vmax.f32 %v728, 0.0
      %v887 = vmax.f32 %v733, 0.0
      %v888 = vmax.f32 %v738, 0.0
      %v889 = vmax.f32 %v743, 0.0
      %v890 = vmax.f32 %v748, 0.0
      %v891 = vmax.f32 %v753, 0.0
      %v892 = vmax.f32 %v758, 0.0
      %v893 = vmax.f32 %v763, 0.0
      %v894 = vmax.f32 %v768, 0.0
      %v895 = vmax.f32 %v773, 0.0
      %v896 = vmax.f32 %v778, 0.0
      %v897 = vmax.f32 %v783, 0.0
      %v898 = vmax.f32 %v788, 0.0
      %v899 = vmax.f32 %v793, 0.0
      %v900 = vmax.f32 %v798, 0.0
      %v901 = vmax.f32 %v803, 0.0
      %v902 = vmax.f32 %v808, 0.0
      %v903 = vmax.f32 %v813, 0.0
      %v904 = vmax.f32 %v818, 0.0
      %v905 = vmax.f32 %v823, 0.0
      %v906 = vmax.f32 %v828, 0.0
      %v907 = vmax.f32 %v833, 0.0
      %v908 = vmax.f32 %v838, 0.0
      %v909 = vmax.f32 %v843, 0.0
      %v910 = vmax.f32 %v848, 0.0
      %v911 = vmax.f32 %v853, 0.0
      %v912 = vmax.f32 %v858, 0.0
      %v913 = vmax.f32 %v863, 0.0
      %v914 = vmax.f32 %v868, 0.0
      %v915 = vmax.f32 %v873, 0.0
      %v916 = vmax.f32 %v878, 0.0
      %v917 = vmax.f32 %v883, 0.0
      %v918 = vld [vmem:[%s5] sm:$0xff]
      %v919 = vld [vmem:[%s5 + $0x8] sm:$0xff]
      %v920 = vld [vmem:[%s5 + $0x10] sm:$0xff]
      %v921 = vld [vmem:[%s5 + $0x18] sm:$0xff]
      %v922 = vld [vmem:[%s5 + $0x20] sm:$0xff]
      %v923 = vld [vmem:[%s5 + $0x28] sm:$0xff]
      %v924 = vld [vmem:[%s5 + $0x30] sm:$0xff]
      %v925 = vld [vmem:[%s5 + $0x38] sm:$0xff]
      %v926 = vld [vmem:[%s5 + $0x40] sm:$0xff]
      %v927 = vld [vmem:[%s5 + $0x48] sm:$0xff]
      %v928 = vld [vmem:[%s5 + $0x50] sm:$0xff]
      %v929 = vld [vmem:[%s5 + $0x58] sm:$0xff]
      %v930 = vld [vmem:[%s5 + $0x60] sm:$0xff]
      %v931 = vld [vmem:[%s5 + $0x68] sm:$0xff]
      %v932 = vld [vmem:[%s5 + $0x70] sm:$0xff]
      %v933 = vld [vmem:[%s5 + $0x78] sm:$0xff]
      %v934 = vld [vmem:[%s6] sm:$0x1]
      %v936 = vlaneseq
      %v937 = vshrl.u32 %v936, 7
      %v938 = vsub.s32 0, %v937
      %v939 = vrot.slane %v934, %v938
      %941 = vmatprep.subr.mxu0 0.0
      %942 = vmatpush1.msra.mxu0 %v933
      %943 = vmatprep.subr.mxu0 0.0
      %944 = vmatpush1.msra.mxu0 %v932
      %945 = vmatprep.subr.mxu0 0.0
      %946 = vmatpush1.msra.mxu0 %v931
      %947 = vmatprep.subr.mxu0 0.0
      %948 = vmatpush1.msra.mxu0 %v930
      %949 = vmatprep.subr.mxu0 0.0
      %950 = vmatpush1.msra.mxu0 %v929
      %951 = vmatprep.subr.mxu0 0.0
      %952 = vmatpush1.msra.mxu0 %v928
      %953 = vmatprep.subr.mxu0 0.0
      %954 = vmatpush1.msra.mxu0 %v927
      %955 = vmatprep.subr.mxu0 0.0
      %956 = vmatpush1.msra.mxu0 %v926
      %957 = vmatprep.subr.mxu0 0.0
      %958 = vmatpush1.msra.mxu0 %v925
      %959 = vmatprep.subr.mxu0 0.0
      %960 = vmatpush1.msra.mxu0 %v924
      %961 = vmatprep.subr.mxu0 0.0
      %962 = vmatpush1.msra.mxu0 %v923
      %963 = vmatprep.subr.mxu0 0.0
      %964 = vmatpush1.msra.mxu0 %v922
      %965 = vmatprep.subr.mxu0 0.0
      %966 = vmatpush1.msra.mxu0 %v921
      %967 = vmatprep.subr.mxu0 0.0
      %968 = vmatpush1.msra.mxu0 %v920
      %969 = vmatprep.subr.mxu0 0.0
      %970 = vmatpush1.msra.mxu0 %v919
      %971 = vmatprep.subr.mxu0 0.0
      %972 = vmatpush1.msra.mxu0 %v918
      %973 = vmatprep.subr.mxu0 0.0
      %974 = vmatpush2.msra.mxu0 0.0
      %975 = vmatprep.subr.mxu0 0.0
      %976 = vmatpush2.msra.mxu0 0.0
      %977 = vmatprep.subr.mxu0 0.0
      %978 = vmatpush2.msra.mxu0 0.0
      %979 = vmatprep.subr.mxu0 0.0
      %980 = vmatpush2.msra.mxu0 0.0
      %981 = vmatprep.subr.mxu0 0.0
      %982 = vmatpush2.msra.mxu0 0.0
      %983 = vmatprep.subr.mxu0 0.0
      %984 = vmatpush2.msra.mxu0 0.0
      %985 = vmatprep.subr.mxu0 0.0
      %986 = vmatpush2.msra.mxu0 0.0
      %987 = vmatprep.subr.mxu0 0.0
      %988 = vmatpush2.msra.mxu0 0.0
      %989 = vmatprep.subr.mxu0 0.0
      %990 = vmatpush2.msra.mxu0 0.0
      %991 = vmatprep.subr.mxu0 0.0
      %992 = vmatpush2.msra.mxu0 0.0
      %993 = vmatprep.subr.mxu0 0.0
      %994 = vmatpush2.msra.mxu0 0.0
      %995 = vmatprep.subr.mxu0 0.0
      %996 = vmatpush2.msra.mxu0 0.0
      %997 = vmatprep.subr.mxu0 0.0
      %998 = vmatpush2.msra.mxu0 0.0
      %999 = vmatprep.subr.mxu0 0.0
      %1000 = vmatpush2.msra.mxu0 0.0
      %1001 = vmatprep.subr.mxu0 0.0
      %1002 = vmatpush2.msra.mxu0 0.0
      %1003 = vmatprep.subr.mxu0 0.0
      %1004 = vmatpush2.msra.mxu0 0.0
      %1005 = vmatprep.mubr.f32.mxu0 0.0
      %1006 = vmatmul.mubr.f32.gmra.mxu0 %v886
      %v1007 = vpop.f32.mrf.mxu0
      %v1008 = vadd.f32 %v939, %v1007
      %v1009 = vpop.f32.mrf.mxu0
      %1010 = vmatprep.mubr.f32.mxu0 0.0
      %1011 = vmatmul.mubr.f32.gmra.mxu0 %v887
      %v1012 = vpop.f32.mrf.mxu0
      %v1013 = vadd.f32 %v939, %v1012
      %v1014 = vpop.f32.mrf.mxu0
      %1015 = vmatprep.mubr.f32.mxu0 0.0
      %1016 = vmatmul.mubr.f32.gmra.mxu0 %v888
      %v1017 = vpop.f32.mrf.mxu0
      %v1018 = vadd.f32 %v939, %v1017
      %v1019 = vpop.f32.mrf.mxu0
      %1020 = vmatprep.mubr.f32.mxu0 0.0
      %1021 = vmatmul.mubr.f32.gmra.mxu0 %v889
      %v1022 = vpop.f32.mrf.mxu0
      %v1023 = vadd.f32 %v939, %v1022
      %v1024 = vpop.f32.mrf.mxu0
      %1025 = vmatprep.mubr.f32.mxu0 0.0
      %1026 = vmatmul.mubr.f32.gmra.mxu0 %v890
      %v1027 = vpop.f32.mrf.mxu0
      %v1028 = vadd.f32 %v939, %v1027
      %v1029 = vpop.f32.mrf.mxu0
      %1030 = vmatprep.mubr.f32.mxu0 0.0
      %1031 = vmatmul.mubr.f32.gmra.mxu0 %v891
      %v1032 = vpop.f32.mrf.mxu0
      %v1033 = vadd.f32 %v939, %v1032
      %v1034 = vpop.f32.mrf.mxu0
      %1035 = vmatprep.mubr.f32.mxu0 0.0
      %1036 = vmatmul.mubr.f32.gmra.mxu0 %v892
      %v1037 = vpop.f32.mrf.mxu0
      %v1038 = vadd.f32 %v939, %v1037
      %v1039 = vpop.f32.mrf.mxu0
      %1040 = vmatprep.mubr.f32.mxu0 0.0
      %1041 = vmatmul.mubr.f32.gmra.mxu0 %v893
      %v1042 = vpop.f32.mrf.mxu0
      %v1043 = vadd.f32 %v939, %v1042
      %v1044 = vpop.f32.mrf.mxu0
      %1045 = vmatprep.mubr.f32.mxu0 0.0
      %1046 = vmatmul.mubr.f32.gmra.mxu0 %v894
      %v1047 = vpop.f32.mrf.mxu0
      %v1048 = vadd.f32 %v939, %v1047
      %v1049 = vpop.f32.mrf.mxu0
      %1050 = vmatprep.mubr.f32.mxu0 0.0
      %1051 = vmatmul.mubr.f32.gmra.mxu0 %v895
      %v1052 = vpop.f32.mrf.mxu0
      %v1053 = vadd.f32 %v939, %v1052
      %v1054 = vpop.f32.mrf.mxu0
      %1055 = vmatprep.mubr.f32.mxu0 0.0
      %1056 = vmatmul.mubr.f32.gmra.mxu0 %v896
      %v1057 = vpop.f32.mrf.mxu0
      %v1058 = vadd.f32 %v939, %v1057
      %v1059 = vpop.f32.mrf.mxu0
      %1060 = vmatprep.mubr.f32.mxu0 0.0
      %1061 = vmatmul.mubr.f32.gmra.mxu0 %v897
      %v1062 = vpop.f32.mrf.mxu0
      %v1063 = vadd.f32 %v939, %v1062
      %v1064 = vpop.f32.mrf.mxu0
      %1065 = vmatprep.mubr.f32.mxu0 0.0
      %1066 = vmatmul.mubr.f32.gmra.mxu0 %v898
      %v1067 = vpop.f32.mrf.mxu0
      %v1068 = vadd.f32 %v939, %v1067
      %v1069 = vpop.f32.mrf.mxu0
      %1070 = vmatprep.mubr.f32.mxu0 0.0
      %1071 = vmatmul.mubr.f32.gmra.mxu0 %v899
      %v1072 = vpop.f32.mrf.mxu0
      %v1073 = vadd.f32 %v939, %v1072
      %v1074 = vpop.f32.mrf.mxu0
      %1075 = vmatprep.mubr.f32.mxu0 0.0
      %1076 = vmatmul.mubr.f32.gmra.mxu0 %v900
      %v1077 = vpop.f32.mrf.mxu0
      %v1078 = vadd.f32 %v939, %v1077
      %v1079 = vpop.f32.mrf.mxu0
      %1080 = vmatprep.mubr.f32.mxu0 0.0
      %1081 = vmatmul.mubr.f32.gmra.mxu0 %v901
      %v1082 = vpop.f32.mrf.mxu0
      %v1083 = vadd.f32 %v939, %v1082
      %v1084 = vpop.f32.mrf.mxu0
      %1085 = vmatprep.mubr.f32.mxu0 0.0
      %1086 = vmatmul.mubr.f32.gmra.mxu0 %v902
      %v1087 = vpop.f32.mrf.mxu0
      %v1088 = vadd.f32 %v939, %v1087
      %v1089 = vpop.f32.mrf.mxu0
      %1090 = vmatprep.mubr.f32.mxu0 0.0
      %1091 = vmatmul.mubr.f32.gmra.mxu0 %v903
      %v1092 = vpop.f32.mrf.mxu0
      %v1093 = vadd.f32 %v939, %v1092
      %v1094 = vpop.f32.mrf.mxu0
      %1095 = vmatprep.mubr.f32.mxu0 0.0
      %1096 = vmatmul.mubr.f32.gmra.mxu0 %v904
      %v1097 = vpop.f32.mrf.mxu0
      %v1098 = vadd.f32 %v939, %v1097
      %v1099 = vpop.f32.mrf.mxu0
      %1100 = vmatprep.mubr.f32.mxu0 0.0
      %1101 = vmatmul.mubr.f32.gmra.mxu0 %v905
      %v1102 = vpop.f32.mrf.mxu0
      %v1103 = vadd.f32 %v939, %v1102
      %v1104 = vpop.f32.mrf.mxu0
      %1105 = vmatprep.mubr.f32.mxu0 0.0
      %1106 = vmatmul.mubr.f32.gmra.mxu0 %v906
      %v1107 = vpop.f32.mrf.mxu0
      %v1108 = vadd.f32 %v939, %v1107
      %v1109 = vpop.f32.mrf.mxu0
      %1110 = vmatprep.mubr.f32.mxu0 0.0
      %1111 = vmatmul.mubr.f32.gmra.mxu0 %v907
      %v1112 = vpop.f32.mrf.mxu0
      %v1113 = vadd.f32 %v939, %v1112
      %v1114 = vpop.f32.mrf.mxu0
      %1115 = vmatprep.mubr.f32.mxu0 0.0
      %1116 = vmatmul.mubr.f32.gmra.mxu0 %v908
      %v1117 = vpop.f32.mrf.mxu0
      %v1118 = vadd.f32 %v939, %v1117
      %v1119 = vpop.f32.mrf.mxu0
      %1120 = vmatprep.mubr.f32.mxu0 0.0
      %1121 = vmatmul.mubr.f32.gmra.mxu0 %v909
      %v1122 = vpop.f32.mrf.mxu0
      %v1123 = vadd.f32 %v939, %v1122
      %v1124 = vpop.f32.mrf.mxu0
      %1125 = vmatprep.mubr.f32.mxu0 0.0
      %1126 = vmatmul.mubr.f32.gmra.mxu0 %v910
      %v1127 = vpop.f32.mrf.mxu0
      %v1128 = vadd.f32 %v939, %v1127
      %v1129 = vpop.f32.mrf.mxu0
      %1130 = vmatprep.mubr.f32.mxu0 0.0
      %1131 = vmatmul.mubr.f32.gmra.mxu0 %v911
      %v1132 = vpop.f32.mrf.mxu0
      %v1133 = vadd.f32 %v939, %v1132
      %v1134 = vpop.f32.mrf.mxu0
      %1135 = vmatprep.mubr.f32.mxu0 0.0
      %1136 = vmatmul.mubr.f32.gmra.mxu0 %v912
      %v1137 = vpop.f32.mrf.mxu0
      %v1138 = vadd.f32 %v939, %v1137
      %v1139 = vpop.f32.mrf.mxu0
      %1140 = vmatprep.mubr.f32.mxu0 0.0
      %1141 = vmatmul.mubr.f32.gmra.mxu0 %v913
      %v1142 = vpop.f32.mrf.mxu0
      %v1143 = vadd.f32 %v939, %v1142
      %v1144 = vpop.f32.mrf.mxu0
      %1145 = vmatprep.mubr.f32.mxu0 0.0
      %1146 = vmatmul.mubr.f32.gmra.mxu0 %v914
      %v1147 = vpop.f32.mrf.mxu0
      %v1148 = vadd.f32 %v939, %v1147
      %v1149 = vpop.f32.mrf.mxu0
      %1150 = vmatprep.mubr.f32.mxu0 0.0
      %1151 = vmatmul.mubr.f32.gmra.mxu0 %v915
      %v1152 = vpop.f32.mrf.mxu0
      %v1153 = vadd.f32 %v939, %v1152
      %v1154 = vpop.f32.mrf.mxu0
      %1155 = vmatprep.mubr.f32.mxu0 0.0
      %1156 = vmatmul.mubr.f32.gmra.mxu0 %v916
      %v1157 = vpop.f32.mrf.mxu0
      %v1158 = vadd.f32 %v939, %v1157
      %v1159 = vpop.f32.mrf.mxu0
      %1160 = vmatprep.mubr.f32.mxu0 0.0
      %1161 = vmatmul.mubr.f32.gmra.mxu0 %v917
      %v1162 = vpop.f32.mrf.mxu0
      %v1163 = vadd.f32 %v939, %v1162
      %v1164 = vpop.f32.mrf.mxu0
      %1165 = vdwg.mxu0
      %v1166 = vmax.f32 %v1008, 0.0
      %v1167 = vmax.f32 %v1013, 0.0
      %v1168 = vmax.f32 %v1018, 0.0
      %v1169 = vmax.f32 %v1023, 0.0
      %v1170 = vmax.f32 %v1028, 0.0
      %v1171 = vmax.f32 %v1033, 0.0
      %v1172 = vmax.f32 %v1038, 0.0
      %v1173 = vmax.f32 %v1043, 0.0
      %v1174 = vmax.f32 %v1048, 0.0
      %v1175 = vmax.f32 %v1053, 0.0
      %v1176 = vmax.f32 %v1058, 0.0
      %v1177 = vmax.f32 %v1063, 0.0
      %v1178 = vmax.f32 %v1068, 0.0
      %v1179 = vmax.f32 %v1073, 0.0
      %v1180 = vmax.f32 %v1078, 0.0
      %v1181 = vmax.f32 %v1083, 0.0
      %v1182 = vmax.f32 %v1088, 0.0
      %v1183 = vmax.f32 %v1093, 0.0
      %v1184 = vmax.f32 %v1098, 0.0
      %v1185 = vmax.f32 %v1103, 0.0
      %v1186 = vmax.f32 %v1108, 0.0
      %v1187 = vmax.f32 %v1113, 0.0
      %v1188 = vmax.f32 %v1118, 0.0
      %v1189 = vmax.f32 %v1123, 0.0
      %v1190 = vmax.f32 %v1128, 0.0
      %v1191 = vmax.f32 %v1133, 0.0
      %v1192 = vmax.f32 %v1138, 0.0
      %v1193 = vmax.f32 %v1143, 0.0
      %v1194 = vmax.f32 %v1148, 0.0
      %v1195 = vmax.f32 %v1153, 0.0
      %v1196 = vmax.f32 %v1158, 0.0
      %v1197 = vmax.f32 %v1163, 0.0
      %v1198 = vld [vmem:[%s7] sm:$0xff]
      %v1199 = vld [vmem:[%s7 + $0x8] sm:$0xff]
      %v1200 = vld [vmem:[%s7 + $0x10] sm:$0xff]
      %v1201 = vld [vmem:[%s7 + $0x18] sm:$0xff]
      %v1202 = vld [vmem:[%s7 + $0x20] sm:$0xff]
      %v1203 = vld [vmem:[%s7 + $0x28] sm:$0xff]
      %v1204 = vld [vmem:[%s7 + $0x30] sm:$0xff]
      %v1205 = vld [vmem:[%s7 + $0x38] sm:$0xff]
      %v1206 = vld [vmem:[%s7 + $0x40] sm:$0xff]
      %v1207 = vld [vmem:[%s7 + $0x48] sm:$0xff]
      %v1208 = vld [vmem:[%s7 + $0x50] sm:$0xff]
      %v1209 = vld [vmem:[%s7 + $0x58] sm:$0xff]
      %v1210 = vld [vmem:[%s7 + $0x60] sm:$0xff]
      %v1211 = vld [vmem:[%s7 + $0x68] sm:$0xff]
      %v1212 = vld [vmem:[%s7 + $0x70] sm:$0xff]
      %v1213 = vld [vmem:[%s7 + $0x78] sm:$0xff]
      %v1214 = vld [vmem:[%s8] sm:$0x1]
      %v1216 = vlaneseq
      %v1217 = vshrl.u32 %v1216, 7
      %v1218 = vsub.s32 0, %v1217
      %v1219 = vrot.slane %v1214, %v1218
      %1221 = vmatprep.subr.mxu0 0.0
      %1222 = vmatpush1.msra.mxu0 %v1213
      %1223 = vmatprep.subr.mxu0 0.0
      %1224 = vmatpush1.msra.mxu0 %v1212
      %1225 = vmatprep.subr.mxu0 0.0
      %1226 = vmatpush1.msra.mxu0 %v1211
      %1227 = vmatprep.subr.mxu0 0.0
      %1228 = vmatpush1.msra.mxu0 %v1210
      %1229 = vmatprep.subr.mxu0 0.0
      %1230 = vmatpush1.msra.mxu0 %v1209
      %1231 = vmatprep.subr.mxu0 0.0
      %1232 = vmatpush1.msra.mxu0 %v1208
      %1233 = vmatprep.subr.mxu0 0.0
      %1234 = vmatpush1.msra.mxu0 %v1207
      %1235 = vmatprep.subr.mxu0 0.0
      %1236 = vmatpush1.msra.mxu0 %v1206
      %1237 = vmatprep.subr.mxu0 0.0
      %1238 = vmatpush1.msra.mxu0 %v1205
      %1239 = vmatprep.subr.mxu0 0.0
      %1240 = vmatpush1.msra.mxu0 %v1204
      %1241 = vmatprep.subr.mxu0 0.0
      %1242 = vmatpush1.msra.mxu0 %v1203
      %1243 = vmatprep.subr.mxu0 0.0
      %1244 = vmatpush1.msra.mxu0 %v1202
      %1245 = vmatprep.subr.mxu0 0.0
      %1246 = vmatpush1.msra.mxu0 %v1201
      %1247 = vmatprep.subr.mxu0 0.0
      %1248 = vmatpush1.msra.mxu0 %v1200
      %1249 = vmatprep.subr.mxu0 0.0
      %1250 = vmatpush1.msra.mxu0 %v1199
      %1251 = vmatprep.subr.mxu0 0.0
      %1252 = vmatpush1.msra.mxu0 %v1198
      %1253 = vmatprep.subr.mxu0 0.0
      %1254 = vmatpush2.msra.mxu0 0.0
      %1255 = vmatprep.subr.mxu0 0.0
      %1256 = vmatpush2.msra.mxu0 0.0
      %1257 = vmatprep.subr.mxu0 0.0
      %1258 = vmatpush2.msra.mxu0 0.0
      %1259 = vmatprep.subr.mxu0 0.0
      %1260 = vmatpush2.msra.mxu0 0.0
      %1261 = vmatprep.subr.mxu0 0.0
      %1262 = vmatpush2.msra.mxu0 0.0
      %1263 = vmatprep.subr.mxu0 0.0
      %1264 = vmatpush2.msra.mxu0 0.0
      %1265 = vmatprep.subr.mxu0 0.0
      %1266 = vmatpush2.msra.mxu0 0.0
      %1267 = vmatprep.subr.mxu0 0.0
      %1268 = vmatpush2.msra.mxu0 0.0
      %1269 = vmatprep.subr.mxu0 0.0
      %1270 = vmatpush2.msra.mxu0 0.0
      %1271 = vmatprep.subr.mxu0 0.0
      %1272 = vmatpush2.msra.mxu0 0.0
      %1273 = vmatprep.subr.mxu0 0.0
      %1274 = vmatpush2.msra.mxu0 0.0
      %1275 = vmatprep.subr.mxu0 0.0
      %1276 = vmatpush2.msra.mxu0 0.0
      %1277 = vmatprep.subr.mxu0 0.0
      %1278 = vmatpush2.msra.mxu0 0.0
      %1279 = vmatprep.subr.mxu0 0.0
      %1280 = vmatpush2.msra.mxu0 0.0
      %1281 = vmatprep.subr.mxu0 0.0
      %1282 = vmatpush2.msra.mxu0 0.0
      %1283 = vmatprep.subr.mxu0 0.0
      %1284 = vmatpush2.msra.mxu0 0.0
      %1285 = vmatprep.mubr.f32.mxu0 0.0
      %1286 = vmatmul.mubr.f32.gmra.mxu0 %v1166
      %v1287 = vpop.f32.mrf.mxu0
      %v1288 = vadd.f32 %v1219, %v1287
      %v1289 = vpop.f32.mrf.mxu0
      %1290 = vmatprep.mubr.f32.mxu0 0.0
      %1291 = vmatmul.mubr.f32.gmra.mxu0 %v1167
      %v1292 = vpop.f32.mrf.mxu0
      %v1293 = vadd.f32 %v1219, %v1292
      %v1294 = vpop.f32.mrf.mxu0
      %1295 = vmatprep.mubr.f32.mxu0 0.0
      %1296 = vmatmul.mubr.f32.gmra.mxu0 %v1168
      %v1297 = vpop.f32.mrf.mxu0
      %v1298 = vadd.f32 %v1219, %v1297
      %v1299 = vpop.f32.mrf.mxu0
      %1300 = vmatprep.mubr.f32.mxu0 0.0
      %1301 = vmatmul.mubr.f32.gmra.mxu0 %v1169
      %v1302 = vpop.f32.mrf.mxu0
      %v1303 = vadd.f32 %v1219, %v1302
      %v1304 = vpop.f32.mrf.mxu0
      %1305 = vmatprep.mubr.f32.mxu0 0.0
      %1306 = vmatmul.mubr.f32.gmra.mxu0 %v1170
      %v1307 = vpop.f32.mrf.mxu0
      %v1308 = vadd.f32 %v1219, %v1307
      %v1309 = vpop.f32.mrf.mxu0
      %1310 = vmatprep.mubr.f32.mxu0 0.0
      %1311 = vmatmul.mubr.f32.gmra.mxu0 %v1171
      %v1312 = vpop.f32.mrf.mxu0
      %v1313 = vadd.f32 %v1219, %v1312
      %v1314 = vpop.f32.mrf.mxu0
      %1315 = vmatprep.mubr.f32.mxu0 0.0
      %1316 = vmatmul.mubr.f32.gmra.mxu0 %v1172
      %v1317 = vpop.f32.mrf.mxu0
      %v1318 = vadd.f32 %v1219, %v1317
      %v1319 = vpop.f32.mrf.mxu0
      %1320 = vmatprep.mubr.f32.mxu0 0.0
      %1321 = vmatmul.mubr.f32.gmra.mxu0 %v1173
      %v1322 = vpop.f32.mrf.mxu0
      %v1323 = vadd.f32 %v1219, %v1322
      %v1324 = vpop.f32.mrf.mxu0
      %1325 = vmatprep.mubr.f32.mxu0 0.0
      %1326 = vmatmul.mubr.f32.gmra.mxu0 %v1174
      %v1327 = vpop.f32.mrf.mxu0
      %v1328 = vadd.f32 %v1219, %v1327
      %v1329 = vpop.f32.mrf.mxu0
      %1330 = vmatprep.mubr.f32.mxu0 0.0
      %1331 = vmatmul.mubr.f32.gmra.mxu0 %v1175
      %v1332 = vpop.f32.mrf.mxu0
      %v1333 = vadd.f32 %v1219, %v1332
      %v1334 = vpop.f32.mrf.mxu0
      %1335 = vmatprep.mubr.f32.mxu0 0.0
      %1336 = vmatmul.mubr.f32.gmra.mxu0 %v1176
      %v1337 = vpop.f32.mrf.mxu0
      %v1338 = vadd.f32 %v1219, %v1337
      %v1339 = vpop.f32.mrf.mxu0
      %1340 = vmatprep.mubr.f32.mxu0 0.0
      %1341 = vmatmul.mubr.f32.gmra.mxu0 %v1177
      %v1342 = vpop.f32.mrf.mxu0
      %v1343 = vadd.f32 %v1219, %v1342
      %v1344 = vpop.f32.mrf.mxu0
      %1345 = vmatprep.mubr.f32.mxu0 0.0
      %1346 = vmatmul.mubr.f32.gmra.mxu0 %v1178
      %v1347 = vpop.f32.mrf.mxu0
      %v1348 = vadd.f32 %v1219, %v1347
      %v1349 = vpop.f32.mrf.mxu0
      %1350 = vmatprep.mubr.f32.mxu0 0.0
      %1351 = vmatmul.mubr.f32.gmra.mxu0 %v1179
      %v1352 = vpop.f32.mrf.mxu0
      %v1353 = vadd.f32 %v1219, %v1352
      %v1354 = vpop.f32.mrf.mxu0
      %1355 = vmatprep.mubr.f32.mxu0 0.0
      %1356 = vmatmul.mubr.f32.gmra.mxu0 %v1180
      %v1357 = vpop.f32.mrf.mxu0
      %v1358 = vadd.f32 %v1219, %v1357
      %v1359 = vpop.f32.mrf.mxu0
      %1360 = vmatprep.mubr.f32.mxu0 0.0
      %1361 = vmatmul.mubr.f32.gmra.mxu0 %v1181
      %v1362 = vpop.f32.mrf.mxu0
      %v1363 = vadd.f32 %v1219, %v1362
      %v1364 = vpop.f32.mrf.mxu0
      %1365 = vmatprep.mubr.f32.mxu0 0.0
      %1366 = vmatmul.mubr.f32.gmra.mxu0 %v1182
      %v1367 = vpop.f32.mrf.mxu0
      %v1368 = vadd.f32 %v1219, %v1367
      %v1369 = vpop.f32.mrf.mxu0
      %1370 = vmatprep.mubr.f32.mxu0 0.0
      %1371 = vmatmul.mubr.f32.gmra.mxu0 %v1183
      %v1372 = vpop.f32.mrf.mxu0
      %v1373 = vadd.f32 %v1219, %v1372
      %v1374 = vpop.f32.mrf.mxu0
      %1375 = vmatprep.mubr.f32.mxu0 0.0
      %1376 = vmatmul.mubr.f32.gmra.mxu0 %v1184
      %v1377 = vpop.f32.mrf.mxu0
      %v1378 = vadd.f32 %v1219, %v1377
      %v1379 = vpop.f32.mrf.mxu0
      %1380 = vmatprep.mubr.f32.mxu0 0.0
      %1381 = vmatmul.mubr.f32.gmra.mxu0 %v1185
      %v1382 = vpop.f32.mrf.mxu0
      %v1383 = vadd.f32 %v1219, %v1382
      %v1384 = vpop.f32.mrf.mxu0
      %1385 = vmatprep.mubr.f32.mxu0 0.0
      %1386 = vmatmul.mubr.f32.gmra.mxu0 %v1186
      %v1387 = vpop.f32.mrf.mxu0
      %v1388 = vadd.f32 %v1219, %v1387
      %v1389 = vpop.f32.mrf.mxu0
      %1390 = vmatprep.mubr.f32.mxu0 0.0
      %1391 = vmatmul.mubr.f32.gmra.mxu0 %v1187
      %v1392 = vpop.f32.mrf.mxu0
      %v1393 = vadd.f32 %v1219, %v1392
      %v1394 = vpop.f32.mrf.mxu0
      %1395 = vmatprep.mubr.f32.mxu0 0.0
      %1396 = vmatmul.mubr.f32.gmra.mxu0 %v1188
      %v1397 = vpop.f32.mrf.mxu0
      %v1398 = vadd.f32 %v1219, %v1397
      %v1399 = vpop.f32.mrf.mxu0
      %1400 = vmatprep.mubr.f32.mxu0 0.0
      %1401 = vmatmul.mubr.f32.gmra.mxu0 %v1189
      %v1402 = vpop.f32.mrf.mxu0
      %v1403 = vadd.f32 %v1219, %v1402
      %v1404 = vpop.f32.mrf.mxu0
      %1405 = vmatprep.mubr.f32.mxu0 0.0
      %1406 = vmatmul.mubr.f32.gmra.mxu0 %v1190
      %v1407 = vpop.f32.mrf.mxu0
      %v1408 = vadd.f32 %v1219, %v1407
      %v1409 = vpop.f32.mrf.mxu0
      %1410 = vmatprep.mubr.f32.mxu0 0.0
      %1411 = vmatmul.mubr.f32.gmra.mxu0 %v1191
      %v1412 = vpop.f32.mrf.mxu0
      %v1413 = vadd.f32 %v1219, %v1412
      %v1414 = vpop.f32.mrf.mxu0
      %1415 = vmatprep.mubr.f32.mxu0 0.0
      %1416 = vmatmul.mubr.f32.gmra.mxu0 %v1192
      %v1417 = vpop.f32.mrf.mxu0
      %v1418 = vadd.f32 %v1219, %v1417
      %v1419 = vpop.f32.mrf.mxu0
      %1420 = vmatprep.mubr.f32.mxu0 0.0
      %1421 = vmatmul.mubr.f32.gmra.mxu0 %v1193
      %v1422 = vpop.f32.mrf.mxu0
      %v1423 = vadd.f32 %v1219, %v1422
      %v1424 = vpop.f32.mrf.mxu0
      %1425 = vmatprep.mubr.f32.mxu0 0.0
      %1426 = vmatmul.mubr.f32.gmra.mxu0 %v1194
      %v1427 = vpop.f32.mrf.mxu0
      %v1428 = vadd.f32 %v1219, %v1427
      %v1429 = vpop.f32.mrf.mxu0
      %1430 = vmatprep.mubr.f32.mxu0 0.0
      %1431 = vmatmul.mubr.f32.gmra.mxu0 %v1195
      %v1432 = vpop.f32.mrf.mxu0
      %v1433 = vadd.f32 %v1219, %v1432
      %v1434 = vpop.f32.mrf.mxu0
      %1435 = vmatprep.mubr.f32.mxu0 0.0
      %1436 = vmatmul.mubr.f32.gmra.mxu0 %v1196
      %v1437 = vpop.f32.mrf.mxu0
      %v1438 = vadd.f32 %v1219, %v1437
      %v1439 = vpop.f32.mrf.mxu0
      %1440 = vmatprep.mubr.f32.mxu0 0.0
      %1441 = vmatmul.mubr.f32.gmra.mxu0 %v1197
      %v1442 = vpop.f32.mrf.mxu0
      %v1443 = vadd.f32 %v1219, %v1442
      %v1444 = vpop.f32.mrf.mxu0
      %1445 = vdwg.mxu0
      %vm1446 = vcmask 818176
      %1447 = vst.msk [vmem:[%s334] sm:$0xff] %vm1446, %v1288
      %1448 = vst.msk [vmem:[%s334 + $0x8] sm:$0xff] %vm1446, %v1293
      %1449 = vst.msk [vmem:[%s334 + $0x10] sm:$0xff] %vm1446, %v1298
      %1450 = vst.msk [vmem:[%s334 + $0x18] sm:$0xff] %vm1446, %v1303
      %1451 = vst.msk [vmem:[%s334 + $0x20] sm:$0xff] %vm1446, %v1308
      %1452 = vst.msk [vmem:[%s334 + $0x28] sm:$0xff] %vm1446, %v1313
      %1453 = vst.msk [vmem:[%s334 + $0x30] sm:$0xff] %vm1446, %v1318
      %1454 = vst.msk [vmem:[%s334 + $0x38] sm:$0xff] %vm1446, %v1323
      %1455 = vst.msk [vmem:[%s334 + $0x40] sm:$0xff] %vm1446, %v1328
      %1456 = vst.msk [vmem:[%s334 + $0x48] sm:$0xff] %vm1446, %v1333
      %1457 = vst.msk [vmem:[%s334 + $0x50] sm:$0xff] %vm1446, %v1338
      %1458 = vst.msk [vmem:[%s334 + $0x58] sm:$0xff] %vm1446, %v1343
      %1459 = vst.msk [vmem:[%s334 + $0x60] sm:$0xff] %vm1446, %v1348
      %1460 = vst.msk [vmem:[%s334 + $0x68] sm:$0xff] %vm1446, %v1353
      %1461 = vst.msk [vmem:[%s334 + $0x70] sm:$0xff] %vm1446, %v1358
      %1462 = vst.msk [vmem:[%s334 + $0x78] sm:$0xff] %vm1446, %v1363
      %1463 = vst.msk [vmem:[%s334 + $0x80] sm:$0xff] %vm1446, %v1368
      %1464 = vst.msk [vmem:[%s334 + $0x88] sm:$0xff] %vm1446, %v1373
      %1465 = vst.msk [vmem:[%s334 + $0x90] sm:$0xff] %vm1446, %v1378
      %1466 = vst.msk [vmem:[%s334 + $0x98] sm:$0xff] %vm1446, %v1383
      %1467 = vst.msk [vmem:[%s334 + $0xa0] sm:$0xff] %vm1446, %v1388
      %1468 = vst.msk [vmem:[%s334 + $0xa8] sm:$0xff] %vm1446, %v1393
      %1469 = vst.msk [vmem:[%s334 + $0xb0] sm:$0xff] %vm1446, %v1398
      %1470 = vst.msk [vmem:[%s334 + $0xb8] sm:$0xff] %vm1446, %v1403
      %1471 = vst.msk [vmem:[%s334 + $0xc0] sm:$0xff] %vm1446, %v1408
      %1472 = vst.msk [vmem:[%s334 + $0xc8] sm:$0xff] %vm1446, %v1413
      %1473 = vst.msk [vmem:[%s334 + $0xd0] sm:$0xff] %vm1446, %v1418
      %1474 = vst.msk [vmem:[%s334 + $0xd8] sm:$0xff] %vm1446, %v1423
      %1475 = vst.msk [vmem:[%s334 + $0xe0] sm:$0xff] %vm1446, %v1428
      %1476 = vst.msk [vmem:[%s334 + $0xe8] sm:$0xff] %vm1446, %v1433
      %1477 = vst.msk [vmem:[%s334 + $0xf0] sm:$0xff] %vm1446, %v1438
      %1478 = vst.msk [vmem:[%s334 + $0xf8] sm:$0xff] %vm1446, %v1443
      %s1479 = smul.u32 32, %s20
      %p1480 = scmp.lt.s32.totalorder %s1479, 63
      %s1481 = scalar_select %p1480, %s1479, 63
      %s1482 = smul.addr %s1481, 8
      %s1483 = scalar_lea.vmem %s9, %s1482
      // Predicated region
      $region57: #{tpu_custom_call.1} parent=55 // pred_check
        %p1484 = pneg %p232
      $region58: #{tpu_custom_call.1} parent=55 // pred_check_branch
        %1486 = sbr.rel (%p1484) target = $region60
      $region59: #{tpu_custom_call.1} parent=55 // pred_region
        %s1487 = smul.u32 32, %s20
      $region60: #{tpu_custom_call.1} parent=55 // pred_fallthru
        _
    $region56: #{tpu_custom_call.1} parent=5 // pred_fallthru
      _
    %p1488 = scmp.le.s32.totalorder 2, %s15
    // Predicated region
    $region61: #{tpu_custom_call.1} parent=5 // pred_check
      %p1489 = pneg %p1488
    $region62: #{tpu_custom_call.1} parent=5 // pred_check_branch
      %1491 = sbr.rel (%p1489) target = $region64
    $region63: #{tpu_custom_call.1} parent=5 // pred_region
      %s1492 = ssub.s32 %s15, 2
      // Predicated region
      $region65: #{tpu_custom_call.1} parent=63 // pred_check
        %p1493 = pneg %p238
      $region66: #{tpu_custom_call.1} parent=63 // pred_check_branch
        %1495 = sbr.rel (%p1493) target = $region68
      $region67: #{tpu_custom_call.1} parent=63 // pred_region
        %s1496 = smul.u32 32, %s21
        %p1497 = scmp.lt.s32.totalorder %s1496, 63
        %s1498 = scalar_select %p1497, %s1496, 63
        %s1499 = smul.addr %s1498, 8
        %s1500 = scalar_lea.vmem %s9, %s1499
      $region68: #{tpu_custom_call.1} parent=63 // pred_fallthru
        _
    $region64: #{tpu_custom_call.1} parent=5 // pred_fallthru
      _
  $region6: #{tpu_custom_call.1} parent=0 // loop_footer
    %s19 = sadd.s32 1, %s15
  $region7: #{tpu_custom_call.1} parent=0 // loop_footer_branch
    %14 = sbr.rel target = $region3
  $region8: #{tpu_custom_call.1} parent=0 // loop_exit
    _

</llo_original>
